<compile_context>
chip_gen: v7x
topology: tpu7x:2x2x1
jax: 0.10.0
libtpu: 0.0.40
codegen_flags: <defaults>
</compile_context>

<pallas_src>
import functools

import jax
import jax.numpy as jnp
from jax import lax
from jax.experimental import pallas as pl
from jax.experimental.pallas import tpu as pltpu


def _multibox_kernel(obj_ref, locs_ref, scores_ref, pr_ref, out_ref, *,
                     threshold, neg_pos_ratio, alpha, n_real_priors,
                     n_objects_max, bisect_iters):
    f32 = jnp.float32
    C = scores_ref.shape[0]
    R, L = pr_ref.shape[1], pr_ref.shape[2]      # dense prior layout (R, 128)
    Pp = R * L
    b = pl.program_id(0)

    # two-step full reductions (lane reduce, then sublane reduce) -> (1, 1)
    def _rsum(x):
        return jnp.sum(jnp.sum(x, axis=1, keepdims=True), axis=0, keepdims=True)

    def _rmax(x):
        return jnp.max(jnp.max(x, axis=1, keepdims=True), axis=0, keepdims=True)

    def _rmin(x):
        return jnp.min(jnp.min(x, axis=1, keepdims=True), axis=0, keepdims=True)

    # dense prior index / pad-lane validity, derived in-kernel (no carried row)
    prior_idx = (lax.broadcasted_iota(jnp.int32, (R, L), 0) * L
                 + lax.broadcasted_iota(jnp.int32, (R, L), 1))       # == p
    lane_valid = prior_idx < n_real_priors

    # ---- matching + GT gather, fused: loop over padded ground-truth objects.
    # Carried state stays in the dense (R, 128) layout; per-object scalars are
    # read from the SMEM object table.  (Gather rides the VPU here instead of
    # the MXU, but it also avoids any [M, P] one-hot / relayout entirely.)
    def obj_body(m, carry):
        best_ov, lbl, gx0, gy0, gx1, gy1 = carry
        base = m * 8
        o_lbl = obj_ref[b, base + 0]
        bx0 = obj_ref[b, base + 1]
        by0 = obj_ref[b, base + 2]
        bx1 = obj_ref[b, base + 3]
        by1 = obj_ref[b, base + 4]
        valid = obj_ref[b, base + 5] > 0.5

        # prior corners re-read from VMEM inside the loop (short live ranges)
        px0 = pr_ref[0]
        py0 = pr_ref[1]
        px1 = pr_ref[2]
        py1 = pr_ref[3]
        area_p = pr_ref[4]

        ix0 = jnp.maximum(px0, bx0)
        iy0 = jnp.maximum(py0, by0)
        ix1 = jnp.minimum(px1, bx1)
        iy1 = jnp.minimum(py1, by1)
        inter = jnp.maximum(ix1 - ix0, 0.0) * jnp.maximum(iy1 - iy0, 0.0)
        area_b = (bx1 - bx0) * (by1 - by0)
        ov = inter / (area_b + area_p - inter)                       # [R, L]
        ov = jnp.where(lane_valid, ov, -1.0)

        # regular assignment: strictly-greater keeps the lowest object index
        # on ties (like torch.max(dim=0))
        upd = (ov > best_ov) & valid
        # forced assignment: this object owns its own best prior (lowest
        # prior index on ties, like torch.max(dim=1)); sequential overwrite
        # over m matches the reference index_put (largest object id wins)
        ov_best = _rmax(ov)
        pbest = _rmin(jnp.where(ov == ov_best, prior_idx, Pp))
        forced = (prior_idx == pbest) & valid

        take = upd | forced
        # forced priors get ov = 2.0 (> any IoU), so later regular updates can
        # never steal them; only "ov >= threshold" matters downstream.
        best_ov = jnp.where(forced, 2.0, jnp.where(upd, ov, best_ov))
        lbl = jnp.where(take, o_lbl, lbl)
        gx0 = jnp.where(take, bx0, gx0)
        gy0 = jnp.where(take, by0, gy0)
        gx1 = jnp.where(take, bx1, gx1)
        gy1 = jnp.where(take, by1, gy1)
        return best_ov, lbl, gx0, gy0, gx1, gy1

    zeros = jnp.zeros((R, L), f32)
    best_ov, lbl, gx0, gy0, gx1, gy1 = lax.fori_loop(
        0, n_objects_max, obj_body,
        (zeros, zeros, zeros, zeros, zeros, zeros))

    lbl = jnp.where(best_ov < threshold, 0.0, lbl)
    lbl_i = lbl.astype(jnp.int32)
    pos = (lbl > 0.5) & lane_valid                                   # [R, L]
    n_pos = _rsum(jnp.where(pos, 1.0, 0.0))                          # (1, 1)

    # ---- localization target encoding + Smooth L1 (positives only) ----
    pcx = pr_ref[5]
    pcy = pr_ref[6]
    inv_pw = pr_ref[7]
    inv_ph = pr_ref[8]
    gcx = (gx0 + gx1) * 0.5
    gcy = (gy0 + gy1) * 0.5
    gw = jnp.maximum(gx1 - gx0, 1e-8)
    gh = jnp.maximum(gy1 - gy0, 1e-8)
    t_cx = (gcx - pcx) * 10.0 * inv_pw
    t_cy = (gcy - pcy) * 10.0 * inv_ph
    t_w = jnp.log(gw * inv_pw) * 5.0
    t_h = jnp.log(gh * inv_ph) * 5.0

    def smooth_l1(d):
        a = jnp.abs(d)
        return jnp.where(a < 1.0, 0.5 * a * a, a - 0.5)

    loc_elem = (smooth_l1(locs_ref[0] - t_cx) + smooth_l1(locs_ref[1] - t_cy)
                + smooth_l1(locs_ref[2] - t_w) + smooth_l1(locs_ref[3] - t_h))
    loc_sum = _rsum(jnp.where(pos, loc_elem, 0.0))                   # (1, 1)

    # ---- per-prior cross entropy: two dense passes over the class axis ----
    s0 = scores_ref[0]
    s_max = s0
    picked = jnp.where(lbl_i == 0, s0, zeros)
    for c in range(1, C):                       # static, fully unrolled
        sc = scores_ref[c]
        s_max = jnp.maximum(s_max, sc)
        picked = jnp.where(lbl_i == c, sc, picked)
    sum_exp = jnp.exp(s0 - s_max)
    for c in range(1, C):
        sum_exp = sum_exp + jnp.exp(scores_ref[c] - s_max)
    conf_all = jnp.log(sum_exp) + s_max - picked                     # [R, L]
    conf_pos_sum = _rsum(jnp.where(pos, conf_all, 0.0))

    # ---- hard negative mining: top-(3*n_pos) negative CE, sort-free ----
    # threshold bisection on dense (R, 128) data; each iteration is one
    # compare + count over ~P/1024 full vregs.
    conf_neg = jnp.where(pos | jnp.logical_not(lane_valid), 0.0, conf_all)
    k = jnp.minimum(neg_pos_ratio * n_pos, float(n_real_priors))     # (1, 1)
    lo = jnp.zeros((1, 1), f32)                   # count(x >= lo) >= k
    hi = _rmax(conf_neg) + 1.0                    # count(x >= hi) <  k
    for _ in range(bisect_iters):
        mid = (lo + hi) * 0.5
        cnt = _rsum(jnp.where(conf_neg >= mid, 1.0, 0.0))
        go_up = cnt >= k
        lo = jnp.where(go_up, mid, lo)
        hi = jnp.where(go_up, hi, mid)
    above = conf_neg >= hi
    sum_hi = _rsum(jnp.where(above, conf_neg, 0.0))
    cnt_hi = _rsum(jnp.where(above, 1.0, 0.0))
    # remaining (k - cnt_hi) elements all lie in [lo, hi) ~= k-th largest value
    conf_neg_sum = sum_hi + jnp.maximum(k - cnt_hi, 0.0) * lo        # (1, 1)

    loss_i = (conf_pos_sum + conf_neg_sum + alpha * loc_sum) / n_pos

    # single lane-dense (8, 128) result tile: row0 = loss term, row1 = n_pos
    row = lax.broadcasted_iota(jnp.int32, (8, 128), 0)
    out_ref[...] = jnp.where(row == 0, loss_i,
                             jnp.where(row == 1, n_pos, 0.0))


def multibox_loss(pred_locs, pred_scores, boxes, labels, n_objects,
                  priors_cxcy, *, threshold=0.5, neg_pos_ratio=3, alpha=1.0,
                  bisect_iters=18):
    """Pallas implementation of MultiBoxLoss.forward.

    pred_locs    [B, P, 4]  float32
    pred_scores  [B, P, C]  float32
    boxes        [B, M, 4]  float32 (xy), padded; real count in n_objects
    labels       [B, M]     int     (0 = padding/background), padded
    n_objects    [B]        int32
    priors_cxcy  [P, 4]     float32
    """
    f32 = jnp.float32
    B, P, _ = pred_locs.shape
    C = pred_scores.shape[-1]
    M = boxes.shape[1]
    L = 128
    Pp = ((P + L - 1) // L) * L          # lane-pad P to a multiple of 128
    R = Pp // L
    pad = Pp - P

    # ---- batch-invariant prior preprocessing, packed in the dense layout ----
    pr = priors_cxcy.astype(f32)
    pcx, pcy, pw, ph = pr[:, 0], pr[:, 1], pr[:, 2], pr[:, 3]
    px0, py0 = pcx - pw * 0.5, pcy - ph * 0.5
    px1, py1 = pcx + pw * 0.5, pcy + ph * 0.5
    area_p = (px1 - px0) * (py1 - py0)
    inv_pw, inv_ph = 1.0 / pw, 1.0 / ph

    def dense(v, fill):
        return jnp.pad(v, (0, pad), constant_values=fill).reshape(R, L)

    priors_pack = jnp.stack(
        [dense(px0, 0.0), dense(py0, 0.0), dense(px1, 0.0), dense(py1, 0.0),
         dense(area_p, 1.0), dense(pcx, 0.0), dense(pcy, 0.0),
         dense(inv_pw, 1.0), dense(inv_ph, 1.0)], axis=0)        # [9, R, 128]

    # TODO(synk): a fused SSD head should emit predictions in [B, 4/C, P]
    # layout upstream so these HBM transposes disappear.
    locs_t = jnp.pad(jnp.transpose(pred_locs, (0, 2, 1)).astype(f32),
                     ((0, 0), (0, 0), (0, pad))).reshape(B, 4, R, L)
    scores_t = jnp.pad(jnp.transpose(pred_scores, (0, 2, 1)).astype(f32),
                       ((0, 0), (0, 0), (0, pad))).reshape(B, C, R, L)

    # per-object scalar table for SMEM: [label, x0, y0, x1, y1, valid, 0, 0]
    valid_f = (jnp.arange(M)[None, :] < n_objects[:, None]).astype(f32)
    boxes_f = boxes.astype(f32)
    obj_tbl = jnp.stack([labels.astype(f32),
                         boxes_f[..., 0], boxes_f[..., 1],
                         boxes_f[..., 2], boxes_f[..., 3],
                         valid_f,
                         jnp.zeros_like(valid_f), jnp.zeros_like(valid_f)],
                        axis=-1).reshape(B, M * 8)               # [B, M*8]

    kernel = functools.partial(
        _multibox_kernel, threshold=float(threshold),
        neg_pos_ratio=float(neg_pos_ratio), alpha=float(alpha),
        n_real_priors=int(P), n_objects_max=int(M),
        bisect_iters=int(bisect_iters))

    out_tiles = pl.pallas_call(
        kernel,
        out_shape=jax.ShapeDtypeStruct((B, 8, 128), jnp.float32),
        grid=(B,),
        in_specs=[
            pl.BlockSpec(memory_space=pltpu.MemorySpace.SMEM),        # objects
            pl.BlockSpec((None, 4, R, L), lambda i: (i, 0, 0, 0)),    # locs
            pl.BlockSpec((None, C, R, L), lambda i: (i, 0, 0, 0)),    # scores
            pl.BlockSpec((9, R, L), lambda i: (0, 0, 0)),             # priors
        ],
        out_specs=pl.BlockSpec((None, 8, 128), lambda i: (i, 0, 0)),
        compiler_params=pltpu.CompilerParams(
            dimension_semantics=("parallel",)),
    )(obj_tbl, locs_t, scores_t, priors_pack)

    per_image = out_tiles[:, 0, 0]          # (conf + alpha*loc) / n_pos_i
    n_pos = out_tiles[:, 1, 0]
    total = jnp.mean(per_image)             # sum_i(...) / batch_size
    # original returns 0 when there are no positives at all
    return jnp.where(jnp.sum(n_pos) > 0, total, jnp.float32(0.0))


def make_priors(P):
    g = int(round(P ** 0.5))
    assert g * g == P
    centers = (jnp.arange(g, dtype=jnp.float32) + 0.5) / g
    cx, cy = jnp.meshgrid(centers, centers, indexing="ij")
    wh = jnp.full((P,), 0.2, dtype=jnp.float32)
    return jnp.stack([cx.ravel(), cy.ravel(), wh, wh], axis=1)   # [P, 4] cxcy


if __name__ == "__main__":
    B, P, C, M = 2, 256, 21, 8          # small shapes (SSD uses P=8732)
    key = jax.random.PRNGKey(0)
    kb, kl, kp, ks = jax.random.split(key, 4)

    priors_cxcy = make_priors(P)

    # synthetic ground-truth boxes: two random corners per object
    pts = jax.random.uniform(kb, (B, M, 2, 2), minval=0.05, maxval=0.9)
    mins = jnp.min(pts, axis=2)
    maxs = jnp.max(pts, axis=2) + 0.05
    boxes = jnp.concatenate([mins, maxs], axis=-1)               # [B, M, 4]
    n_objects = jnp.array([3, 2], dtype=jnp.int32)
    valid = jnp.arange(M)[None, :] < n_objects[:, None]
    pad_box = jnp.array([0.0, 0.0, 1.0, 1.0], dtype=jnp.float32)
    boxes = jnp.where(valid[..., None], boxes, pad_box)
    labels = jax.random.randint(kl, (B, M), 1, C)                # classes 1..20
    labels = jnp.where(valid, labels, 0)

    pred_locs = jax.random.normal(kp, (B, P, 4), dtype=jnp.float32)
    pred_scores = jax.random.normal(ks, (B, P, C), dtype=jnp.float32)

    loss = multibox_loss(pred_locs, pred_scores, boxes, labels,
                         n_objects, priors_cxcy)
    loss = jax.block_until_ready(loss)
    assert bool(jnp.isfinite(loss)), "loss is not finite"
    print("KERNEL_OK")
</pallas_src>

<mosaic_0001>
module attributes {stable_mosaic.version = 11 : i64} {
  func.func @_multibox_kernel(%arg0: i32, %arg1: memref<2x64xf32, #tpu.memory_space<smem>>, %arg2: memref<1x4x2x128xf32, #tpu.memory_space<vmem>>, %arg3: memref<1x21x2x128xf32, #tpu.memory_space<vmem>>, %arg4: memref<9x2x128xf32, #tpu.memory_space<vmem>>, %arg5: memref<1x8x128xf32, #tpu.memory_space<vmem>>) attributes {dimension_semantics = [#tpu.dimension_semantics<parallel>], iteration_bounds = array<i64: 2>, scalar_prefetch = 0 : i64, scratch_operands = 0 : i64, tpu.core_type = #tpu.core_type<tc>, window_params = [{transform_indices = @transform_0, window_bounds = array<i64: 2, 64>}, {transform_indices = @transform_1, window_bounds = array<i64: 1, 4, 2, 128>}, {transform_indices = @transform_2, window_bounds = array<i64: 1, 21, 2, 128>}, {pipeline_mode = #tpu.pipeline_mode<synchronous>, transform_indices = @transform_3, window_bounds = array<i64: 9, 2, 128>}, {transform_indices = @transform_4, window_bounds = array<i64: 1, 8, 128>}]} {
    %0 = tpu.iota {dimensions = array<i32: 0>} : vector<2x128xi32>
    %c128_i32 = arith.constant 128 : i32
    %1 = vector.broadcast %c128_i32 : i32 to vector<2x128xi32>
    %2 = arith.muli %0, %1 : vector<2x128xi32>
    %3 = tpu.iota {dimensions = array<i32: 1>} : vector<2x128xi32>
    %4 = arith.addi %2, %3 : vector<2x128xi32>
    %c256_i32 = arith.constant 256 : i32
    %5 = vector.broadcast %c256_i32 : i32 to vector<2x128xi32>
    %6 = arith.cmpi slt, %4, %5 : vector<2x128xi32>
    %cst = arith.constant 0.000000e+00 : f32
    %7 = vector.broadcast %cst : f32 to vector<2x128xf32>
    %c0_i32 = arith.constant 0 : i32
    %c8_i32 = arith.constant 8 : i32
    %8 = arith.addi %c0_i32, %c8_i32 : i32
    %c1_i32 = arith.constant 1 : i32
    %9:6 = scf.for %arg6 = %c0_i32 to %8 step %c1_i32 iter_args(%arg7 = %7, %arg8 = %7, %arg9 = %7, %arg10 = %7, %arg11 = %7, %arg12 = %7) -> (vector<2x128xf32>, vector<2x128xf32>, vector<2x128xf32>, vector<2x128xf32>, vector<2x128xf32>, vector<2x128xf32>)  : i32 {
      %c8_i32_321 = arith.constant 8 : i32
      %679 = arith.muli %arg6, %c8_i32_321 : i32
      %c0_i32_322 = arith.constant 0 : i32
      %680 = arith.addi %679, %c0_i32_322 : i32
      %681 = arith.index_cast %arg0 : i32 to index
      %682 = arith.index_cast %680 : i32 to index
      %683 = memref.load %arg1[%681, %682] : memref<2x64xf32, #tpu.memory_space<smem>>
      %c1_i32_323 = arith.constant 1 : i32
      %684 = arith.addi %679, %c1_i32_323 : i32
      %685 = arith.index_cast %arg0 : i32 to index
      %686 = arith.index_cast %684 : i32 to index
      %687 = memref.load %arg1[%685, %686] : memref<2x64xf32, #tpu.memory_space<smem>>
      %c2_i32_324 = arith.constant 2 : i32
      %688 = arith.addi %679, %c2_i32_324 : i32
      %689 = arith.index_cast %arg0 : i32 to index
      %690 = arith.index_cast %688 : i32 to index
      %691 = memref.load %arg1[%689, %690] : memref<2x64xf32, #tpu.memory_space<smem>>
      %c3_i32_325 = arith.constant 3 : i32
      %692 = arith.addi %679, %c3_i32_325 : i32
      %693 = arith.index_cast %arg0 : i32 to index
      %694 = arith.index_cast %692 : i32 to index
      %695 = memref.load %arg1[%693, %694] : memref<2x64xf32, #tpu.memory_space<smem>>
      %c4_i32_326 = arith.constant 4 : i32
      %696 = arith.addi %679, %c4_i32_326 : i32
      %697 = arith.index_cast %arg0 : i32 to index
      %698 = arith.index_cast %696 : i32 to index
      %699 = memref.load %arg1[%697, %698] : memref<2x64xf32, #tpu.memory_space<smem>>
      %c5_i32_327 = arith.constant 5 : i32
      %700 = arith.addi %679, %c5_i32_327 : i32
      %701 = arith.index_cast %arg0 : i32 to index
      %702 = arith.index_cast %700 : i32 to index
      %703 = memref.load %arg1[%701, %702] : memref<2x64xf32, #tpu.memory_space<smem>>
      %cst_328 = arith.constant 5.000000e-01 : f32
      %704 = arith.cmpf ogt, %703, %cst_328 : f32
      %c0_329 = arith.constant 0 : index
      %c0_330 = arith.constant 0 : index
      %c0_331 = arith.constant 0 : index
      %705 = vector.load %arg4[%c0_329, %c0_330, %c0_331] : memref<9x2x128xf32, #tpu.memory_space<vmem>>, vector<1x2x128xf32>
      %706 = vector.shape_cast %705 : vector<1x2x128xf32> to vector<2x128xf32>
      %c1_332 = arith.constant 1 : index
      %c0_333 = arith.constant 0 : index
      %c0_334 = arith.constant 0 : index
      %707 = vector.load %arg4[%c1_332, %c0_333, %c0_334] : memref<9x2x128xf32, #tpu.memory_space<vmem>>, vector<1x2x128xf32>
      %708 = vector.shape_cast %707 : vector<1x2x128xf32> to vector<2x128xf32>
      %c2_335 = arith.constant 2 : index
      %c0_336 = arith.constant 0 : index
      %c0_337 = arith.constant 0 : index
      %709 = vector.load %arg4[%c2_335, %c0_336, %c0_337] : memref<9x2x128xf32, #tpu.memory_space<vmem>>, vector<1x2x128xf32>
      %710 = vector.shape_cast %709 : vector<1x2x128xf32> to vector<2x128xf32>
      %c3_338 = arith.constant 3 : index
      %c0_339 = arith.constant 0 : index
      %c0_340 = arith.constant 0 : index
      %711 = vector.load %arg4[%c3_338, %c0_339, %c0_340] : memref<9x2x128xf32, #tpu.memory_space<vmem>>, vector<1x2x128xf32>
      %712 = vector.shape_cast %711 : vector<1x2x128xf32> to vector<2x128xf32>
      %c4_341 = arith.constant 4 : index
      %c0_342 = arith.constant 0 : index
      %c0_343 = arith.constant 0 : index
      %713 = vector.load %arg4[%c4_341, %c0_342, %c0_343] : memref<9x2x128xf32, #tpu.memory_space<vmem>>, vector<1x2x128xf32>
      %714 = vector.shape_cast %713 : vector<1x2x128xf32> to vector<2x128xf32>
      %715 = vector.broadcast %687 : f32 to vector<2x128xf32>
      %716 = arith.maximumf %706, %715 : vector<2x128xf32>
      %717 = vector.broadcast %691 : f32 to vector<2x128xf32>
      %718 = arith.maximumf %708, %717 : vector<2x128xf32>
      %719 = vector.broadcast %695 : f32 to vector<2x128xf32>
      %720 = arith.minimumf %710, %719 : vector<2x128xf32>
      %721 = vector.broadcast %699 : f32 to vector<2x128xf32>
      %722 = arith.minimumf %712, %721 : vector<2x128xf32>
      %723 = arith.subf %720, %716 : vector<2x128xf32>
      %cst_344 = arith.constant 0.000000e+00 : f32
      %724 = vector.broadcast %cst_344 : f32 to vector<2x128xf32>
      %725 = arith.maximumf %723, %724 : vector<2x128xf32>
      %726 = arith.subf %722, %718 : vector<2x128xf32>
      %cst_345 = arith.constant 0.000000e+00 : f32
      %727 = vector.broadcast %cst_345 : f32 to vector<2x128xf32>
      %728 = arith.maximumf %726, %727 : vector<2x128xf32>
      %729 = arith.mulf %725, %728 : vector<2x128xf32>
      %730 = arith.subf %695, %687 : f32
      %731 = arith.subf %699, %691 : f32
      %732 = arith.mulf %730, %731 : f32
      %733 = vector.broadcast %732 : f32 to vector<2x128xf32>
      %734 = arith.addf %733, %714 : vector<2x128xf32>
      %735 = arith.subf %734, %729 : vector<2x128xf32>
      %736 = arith.divf %729, %735 : vector<2x128xf32>
      %cst_346 = arith.constant -1.000000e+00 : f32
      %737 = vector.broadcast %cst_346 : f32 to vector<2x128xf32>
      %738 = arith.select %6, %736, %737 : vector<2x128xi1>, vector<2x128xf32>
      %739 = arith.cmpf ogt, %738, %arg7 : vector<2x128xf32>
      %740 = vector.broadcast %704 : i1 to vector<2x128xi1>
      %741 = arith.andi %739, %740 : vector<2x128xi1>
      %cst_347 = arith.constant dense<0xFF800000> : vector<2xf32>
      %742 = vector.multi_reduction <maximumf>, %738, %cst_347 [1] : vector<2x128xf32> to vector<2xf32>
      %743 = vector.shape_cast %742 : vector<2xf32> to vector<2x1xf32>
      %cst_348 = arith.constant dense<0xFF800000> : vector<1xf32>
      %744 = vector.multi_reduction <maximumf>, %743, %cst_348 [0] : vector<2x1xf32> to vector<1xf32>
      %745 = vector.shape_cast %744 : vector<1xf32> to vector<1x1xf32>
      %746 = vector.broadcast %745 : vector<1x1xf32> to vector<2x128xf32>
      %747 = arith.cmpf oeq, %738, %746 : vector<2x128xf32>
      %c256_i32_349 = arith.constant 256 : i32
      %748 = vector.broadcast %c256_i32_349 : i32 to vector<2x128xi32>
      %749 = arith.select %747, %4, %748 : vector<2x128xi1>, vector<2x128xi32>
      %cst_350 = arith.constant dense<2147483647> : vector<2xi32>
      %750 = vector.multi_reduction <minsi>, %749, %cst_350 [1] : vector<2x128xi32> to vector<2xi32>
      %751 = vector.shape_cast %750 : vector<2xi32> to vector<2x1xi32>
      %cst_351 = arith.constant dense<2147483647> : vector<1xi32>
      %752 = vector.multi_reduction <minsi>, %751, %cst_351 [0] : vector<2x1xi32> to vector<1xi32>
      %753 = vector.shape_cast %752 : vector<1xi32> to vector<1x1xi32>
      %754 = vector.broadcast %753 : vector<1x1xi32> to vector<2x128xi32>
      %755 = arith.cmpi eq, %4, %754 : vector<2x128xi32>
      %756 = vector.broadcast %704 : i1 to vector<2x128xi1>
      %757 = arith.andi %755, %756 : vector<2x128xi1>
      %758 = arith.ori %741, %757 : vector<2x128xi1>
      %759 = arith.select %741, %738, %arg7 : vector<2x128xi1>, vector<2x128xf32>
      %cst_352 = arith.constant 2.000000e+00 : f32
      %760 = vector.broadcast %cst_352 : f32 to vector<2x128xf32>
      %761 = arith.select %757, %760, %759 : vector<2x128xi1>, vector<2x128xf32>
      %762 = vector.broadcast %683 : f32 to vector<2x128xf32>
      %763 = arith.select %758, %762, %arg8 : vector<2x128xi1>, vector<2x128xf32>
      %764 = vector.broadcast %687 : f32 to vector<2x128xf32>
      %765 = arith.select %758, %764, %arg9 : vector<2x128xi1>, vector<2x128xf32>
      %766 = vector.broadcast %691 : f32 to vector<2x128xf32>
      %767 = arith.select %758, %766, %arg10 : vector<2x128xi1>, vector<2x128xf32>
      %768 = vector.broadcast %695 : f32 to vector<2x128xf32>
      %769 = arith.select %758, %768, %arg11 : vector<2x128xi1>, vector<2x128xf32>
      %770 = vector.broadcast %699 : f32 to vector<2x128xf32>
      %771 = arith.select %758, %770, %arg12 : vector<2x128xi1>, vector<2x128xf32>
      scf.yield %761, %763, %765, %767, %769, %771 : vector<2x128xf32>, vector<2x128xf32>, vector<2x128xf32>, vector<2x128xf32>, vector<2x128xf32>, vector<2x128xf32>
    }
    %c8_i32_0 = arith.constant 8 : i32
    %cst_1 = arith.constant 5.000000e-01 : f32
    %10 = vector.broadcast %cst_1 : f32 to vector<2x128xf32>
    %11 = arith.cmpf olt, %9#0, %10 : vector<2x128xf32>
    %cst_2 = arith.constant 0.000000e+00 : f32
    %12 = vector.broadcast %cst_2 : f32 to vector<2x128xf32>
    %13 = arith.select %11, %12, %9#1 : vector<2x128xi1>, vector<2x128xf32>
    %14 = arith.fptosi %13 : vector<2x128xf32> to vector<2x128xi32>
    %cst_3 = arith.constant 5.000000e-01 : f32
    %15 = vector.broadcast %cst_3 : f32 to vector<2x128xf32>
    %16 = arith.cmpf ogt, %13, %15 : vector<2x128xf32>
    %17 = arith.andi %16, %6 : vector<2x128xi1>
    %cst_4 = arith.constant 1.000000e+00 : f32
    %cst_5 = arith.constant 0.000000e+00 : f32
    %18 = vector.broadcast %cst_4 : f32 to vector<2x128xf32>
    %19 = vector.broadcast %cst_5 : f32 to vector<2x128xf32>
    %20 = arith.select %17, %18, %19 : vector<2x128xi1>, vector<2x128xf32>
    %cst_6 = arith.constant dense<0.000000e+00> : vector<2xf32>
    %21 = vector.multi_reduction <add>, %20, %cst_6 [1] : vector<2x128xf32> to vector<2xf32>
    %22 = vector.shape_cast %21 : vector<2xf32> to vector<2x1xf32>
    %cst_7 = arith.constant dense<0.000000e+00> : vector<1xf32>
    %23 = vector.multi_reduction <add>, %22, %cst_7 [0] : vector<2x1xf32> to vector<1xf32>
    %24 = vector.shape_cast %23 : vector<1xf32> to vector<1x1xf32>
    %c5 = arith.constant 5 : index
    %c0 = arith.constant 0 : index
    %c0_8 = arith.constant 0 : index
    %25 = vector.load %arg4[%c5, %c0, %c0_8] : memref<9x2x128xf32, #tpu.memory_space<vmem>>, vector<1x2x128xf32>
    %26 = vector.shape_cast %25 : vector<1x2x128xf32> to vector<2x128xf32>
    %c6 = arith.constant 6 : index
    %c0_9 = arith.constant 0 : index
    %c0_10 = arith.constant 0 : index
    %27 = vector.load %arg4[%c6, %c0_9, %c0_10] : memref<9x2x128xf32, #tpu.memory_space<vmem>>, vector<1x2x128xf32>
    %28 = vector.shape_cast %27 : vector<1x2x128xf32> to vector<2x128xf32>
    %c7 = arith.constant 7 : index
    %c0_11 = arith.constant 0 : index
    %c0_12 = arith.constant 0 : index
    %29 = vector.load %arg4[%c7, %c0_11, %c0_12] : memref<9x2x128xf32, #tpu.memory_space<vmem>>, vector<1x2x128xf32>
    %30 = vector.shape_cast %29 : vector<1x2x128xf32> to vector<2x128xf32>
    %c8 = arith.constant 8 : index
    %c0_13 = arith.constant 0 : index
    %c0_14 = arith.constant 0 : index
    %31 = vector.load %arg4[%c8, %c0_13, %c0_14] : memref<9x2x128xf32, #tpu.memory_space<vmem>>, vector<1x2x128xf32>
    %32 = vector.shape_cast %31 : vector<1x2x128xf32> to vector<2x128xf32>
    %33 = arith.addf %9#2, %9#4 : vector<2x128xf32>
    %cst_15 = arith.constant 5.000000e-01 : f32
    %34 = vector.broadcast %cst_15 : f32 to vector<2x128xf32>
    %35 = arith.mulf %33, %34 : vector<2x128xf32>
    %36 = arith.addf %9#3, %9#5 : vector<2x128xf32>
    %cst_16 = arith.constant 5.000000e-01 : f32
    %37 = vector.broadcast %cst_16 : f32 to vector<2x128xf32>
    %38 = arith.mulf %36, %37 : vector<2x128xf32>
    %39 = arith.subf %9#4, %9#2 : vector<2x128xf32>
    %cst_17 = arith.constant 9.99999993E-9 : f32
    %40 = vector.broadcast %cst_17 : f32 to vector<2x128xf32>
    %41 = arith.maximumf %39, %40 : vector<2x128xf32>
    %42 = arith.subf %9#5, %9#3 : vector<2x128xf32>
    %cst_18 = arith.constant 9.99999993E-9 : f32
    %43 = vector.broadcast %cst_18 : f32 to vector<2x128xf32>
    %44 = arith.maximumf %42, %43 : vector<2x128xf32>
    %45 = arith.subf %35, %26 : vector<2x128xf32>
    %cst_19 = arith.constant 1.000000e+01 : f32
    %46 = vector.broadcast %cst_19 : f32 to vector<2x128xf32>
    %47 = arith.mulf %45, %46 : vector<2x128xf32>
    %48 = arith.mulf %47, %30 : vector<2x128xf32>
    %49 = arith.subf %38, %28 : vector<2x128xf32>
    %cst_20 = arith.constant 1.000000e+01 : f32
    %50 = vector.broadcast %cst_20 : f32 to vector<2x128xf32>
    %51 = arith.mulf %49, %50 : vector<2x128xf32>
    %52 = arith.mulf %51, %32 : vector<2x128xf32>
    %53 = arith.mulf %41, %30 : vector<2x128xf32>
    %54 = math.log %53 : vector<2x128xf32>
    %cst_21 = arith.constant 5.000000e+00 : f32
    %55 = vector.broadcast %cst_21 : f32 to vector<2x128xf32>
    %56 = arith.mulf %54, %55 : vector<2x128xf32>
    %57 = arith.mulf %44, %32 : vector<2x128xf32>
    %58 = math.log %57 : vector<2x128xf32>
    %cst_22 = arith.constant 5.000000e+00 : f32
    %59 = vector.broadcast %cst_22 : f32 to vector<2x128xf32>
    %60 = arith.mulf %58, %59 : vector<2x128xf32>
    %c0_23 = arith.constant 0 : index
    %c0_24 = arith.constant 0 : index
    %c0_25 = arith.constant 0 : index
    %c0_26 = arith.constant 0 : index
    %61 = vector.load %arg2[%c0_23, %c0_24, %c0_25, %c0_26] : memref<1x4x2x128xf32, #tpu.memory_space<vmem>>, vector<1x1x2x128xf32>
    %62 = vector.shape_cast %61 : vector<1x1x2x128xf32> to vector<2x128xf32>
    %63 = arith.subf %62, %48 : vector<2x128xf32>
    %64 = math.absf %63 : vector<2x128xf32>
    %cst_27 = arith.constant 1.000000e+00 : f32
    %65 = vector.broadcast %cst_27 : f32 to vector<2x128xf32>
    %66 = arith.cmpf olt, %64, %65 : vector<2x128xf32>
    %cst_28 = arith.constant 5.000000e-01 : f32
    %67 = vector.broadcast %cst_28 : f32 to vector<2x128xf32>
    %68 = arith.mulf %67, %64 : vector<2x128xf32>
    %69 = arith.mulf %68, %64 : vector<2x128xf32>
    %cst_29 = arith.constant 5.000000e-01 : f32
    %70 = vector.broadcast %cst_29 : f32 to vector<2x128xf32>
    %71 = arith.subf %64, %70 : vector<2x128xf32>
    %72 = arith.select %66, %69, %71 : vector<2x128xi1>, vector<2x128xf32>
    %c0_30 = arith.constant 0 : index
    %c1 = arith.constant 1 : index
    %c0_31 = arith.constant 0 : index
    %c0_32 = arith.constant 0 : index
    %73 = vector.load %arg2[%c0_30, %c1, %c0_31, %c0_32] : memref<1x4x2x128xf32, #tpu.memory_space<vmem>>, vector<1x1x2x128xf32>
    %74 = vector.shape_cast %73 : vector<1x1x2x128xf32> to vector<2x128xf32>
    %75 = arith.subf %74, %52 : vector<2x128xf32>
    %76 = math.absf %75 : vector<2x128xf32>
    %cst_33 = arith.constant 1.000000e+00 : f32
    %77 = vector.broadcast %cst_33 : f32 to vector<2x128xf32>
    %78 = arith.cmpf olt, %76, %77 : vector<2x128xf32>
    %cst_34 = arith.constant 5.000000e-01 : f32
    %79 = vector.broadcast %cst_34 : f32 to vector<2x128xf32>
    %80 = arith.mulf %79, %76 : vector<2x128xf32>
    %81 = arith.mulf %80, %76 : vector<2x128xf32>
    %cst_35 = arith.constant 5.000000e-01 : f32
    %82 = vector.broadcast %cst_35 : f32 to vector<2x128xf32>
    %83 = arith.subf %76, %82 : vector<2x128xf32>
    %84 = arith.select %78, %81, %83 : vector<2x128xi1>, vector<2x128xf32>
    %85 = arith.addf %72, %84 : vector<2x128xf32>
    %c0_36 = arith.constant 0 : index
    %c2 = arith.constant 2 : index
    %c0_37 = arith.constant 0 : index
    %c0_38 = arith.constant 0 : index
    %86 = vector.load %arg2[%c0_36, %c2, %c0_37, %c0_38] : memref<1x4x2x128xf32, #tpu.memory_space<vmem>>, vector<1x1x2x128xf32>
    %87 = vector.shape_cast %86 : vector<1x1x2x128xf32> to vector<2x128xf32>
    %88 = arith.subf %87, %56 : vector<2x128xf32>
    %89 = math.absf %88 : vector<2x128xf32>
    %cst_39 = arith.constant 1.000000e+00 : f32
    %90 = vector.broadcast %cst_39 : f32 to vector<2x128xf32>
    %91 = arith.cmpf olt, %89, %90 : vector<2x128xf32>
    %cst_40 = arith.constant 5.000000e-01 : f32
    %92 = vector.broadcast %cst_40 : f32 to vector<2x128xf32>
    %93 = arith.mulf %92, %89 : vector<2x128xf32>
    %94 = arith.mulf %93, %89 : vector<2x128xf32>
    %cst_41 = arith.constant 5.000000e-01 : f32
    %95 = vector.broadcast %cst_41 : f32 to vector<2x128xf32>
    %96 = arith.subf %89, %95 : vector<2x128xf32>
    %97 = arith.select %91, %94, %96 : vector<2x128xi1>, vector<2x128xf32>
    %98 = arith.addf %85, %97 : vector<2x128xf32>
    %c0_42 = arith.constant 0 : index
    %c3 = arith.constant 3 : index
    %c0_43 = arith.constant 0 : index
    %c0_44 = arith.constant 0 : index
    %99 = vector.load %arg2[%c0_42, %c3, %c0_43, %c0_44] : memref<1x4x2x128xf32, #tpu.memory_space<vmem>>, vector<1x1x2x128xf32>
    %100 = vector.shape_cast %99 : vector<1x1x2x128xf32> to vector<2x128xf32>
    %101 = arith.subf %100, %60 : vector<2x128xf32>
    %102 = math.absf %101 : vector<2x128xf32>
    %cst_45 = arith.constant 1.000000e+00 : f32
    %103 = vector.broadcast %cst_45 : f32 to vector<2x128xf32>
    %104 = arith.cmpf olt, %102, %103 : vector<2x128xf32>
    %cst_46 = arith.constant 5.000000e-01 : f32
    %105 = vector.broadcast %cst_46 : f32 to vector<2x128xf32>
    %106 = arith.mulf %105, %102 : vector<2x128xf32>
    %107 = arith.mulf %106, %102 : vector<2x128xf32>
    %cst_47 = arith.constant 5.000000e-01 : f32
    %108 = vector.broadcast %cst_47 : f32 to vector<2x128xf32>
    %109 = arith.subf %102, %108 : vector<2x128xf32>
    %110 = arith.select %104, %107, %109 : vector<2x128xi1>, vector<2x128xf32>
    %111 = arith.addf %98, %110 : vector<2x128xf32>
    %cst_48 = arith.constant 0.000000e+00 : f32
    %112 = vector.broadcast %cst_48 : f32 to vector<2x128xf32>
    %113 = arith.select %17, %111, %112 : vector<2x128xi1>, vector<2x128xf32>
    %cst_49 = arith.constant dense<0.000000e+00> : vector<2xf32>
    %114 = vector.multi_reduction <add>, %113, %cst_49 [1] : vector<2x128xf32> to vector<2xf32>
    %115 = vector.shape_cast %114 : vector<2xf32> to vector<2x1xf32>
    %cst_50 = arith.constant dense<0.000000e+00> : vector<1xf32>
    %116 = vector.multi_reduction <add>, %115, %cst_50 [0] : vector<2x1xf32> to vector<1xf32>
    %117 = vector.shape_cast %116 : vector<1xf32> to vector<1x1xf32>
    %c0_51 = arith.constant 0 : index
    %c0_52 = arith.constant 0 : index
    %c0_53 = arith.constant 0 : index
    %c0_54 = arith.constant 0 : index
    %118 = vector.load %arg3[%c0_51, %c0_52, %c0_53, %c0_54] : memref<1x21x2x128xf32, #tpu.memory_space<vmem>>, vector<1x1x2x128xf32>
    %119 = vector.shape_cast %118 : vector<1x1x2x128xf32> to vector<2x128xf32>
    %c0_i32_55 = arith.constant 0 : i32
    %120 = vector.broadcast %c0_i32_55 : i32 to vector<2x128xi32>
    %121 = arith.cmpi eq, %14, %120 : vector<2x128xi32>
    %122 = arith.select %121, %119, %7 : vector<2x128xi1>, vector<2x128xf32>
    %c0_56 = arith.constant 0 : index
    %c1_57 = arith.constant 1 : index
    %c0_58 = arith.constant 0 : index
    %c0_59 = arith.constant 0 : index
    %123 = vector.load %arg3[%c0_56, %c1_57, %c0_58, %c0_59] : memref<1x21x2x128xf32, #tpu.memory_space<vmem>>, vector<1x1x2x128xf32>
    %124 = vector.shape_cast %123 : vector<1x1x2x128xf32> to vector<2x128xf32>
    %125 = arith.maximumf %119, %124 : vector<2x128xf32>
    %c1_i32_60 = arith.constant 1 : i32
    %126 = vector.broadcast %c1_i32_60 : i32 to vector<2x128xi32>
    %127 = arith.cmpi eq, %14, %126 : vector<2x128xi32>
    %128 = arith.select %127, %124, %122 : vector<2x128xi1>, vector<2x128xf32>
    %c0_61 = arith.constant 0 : index
    %c2_62 = arith.constant 2 : index
    %c0_63 = arith.constant 0 : index
    %c0_64 = arith.constant 0 : index
    %129 = vector.load %arg3[%c0_61, %c2_62, %c0_63, %c0_64] : memref<1x21x2x128xf32, #tpu.memory_space<vmem>>, vector<1x1x2x128xf32>
    %130 = vector.shape_cast %129 : vector<1x1x2x128xf32> to vector<2x128xf32>
    %131 = arith.maximumf %125, %130 : vector<2x128xf32>
    %c2_i32 = arith.constant 2 : i32
    %132 = vector.broadcast %c2_i32 : i32 to vector<2x128xi32>
    %133 = arith.cmpi eq, %14, %132 : vector<2x128xi32>
    %134 = arith.select %133, %130, %128 : vector<2x128xi1>, vector<2x128xf32>
    %c0_65 = arith.constant 0 : index
    %c3_66 = arith.constant 3 : index
    %c0_67 = arith.constant 0 : index
    %c0_68 = arith.constant 0 : index
    %135 = vector.load %arg3[%c0_65, %c3_66, %c0_67, %c0_68] : memref<1x21x2x128xf32, #tpu.memory_space<vmem>>, vector<1x1x2x128xf32>
    %136 = vector.shape_cast %135 : vector<1x1x2x128xf32> to vector<2x128xf32>
    %137 = arith.maximumf %131, %136 : vector<2x128xf32>
    %c3_i32 = arith.constant 3 : i32
    %138 = vector.broadcast %c3_i32 : i32 to vector<2x128xi32>
    %139 = arith.cmpi eq, %14, %138 : vector<2x128xi32>
    %140 = arith.select %139, %136, %134 : vector<2x128xi1>, vector<2x128xf32>
    %c0_69 = arith.constant 0 : index
    %c4 = arith.constant 4 : index
    %c0_70 = arith.constant 0 : index
    %c0_71 = arith.constant 0 : index
    %141 = vector.load %arg3[%c0_69, %c4, %c0_70, %c0_71] : memref<1x21x2x128xf32, #tpu.memory_space<vmem>>, vector<1x1x2x128xf32>
    %142 = vector.shape_cast %141 : vector<1x1x2x128xf32> to vector<2x128xf32>
    %143 = arith.maximumf %137, %142 : vector<2x128xf32>
    %c4_i32 = arith.constant 4 : i32
    %144 = vector.broadcast %c4_i32 : i32 to vector<2x128xi32>
    %145 = arith.cmpi eq, %14, %144 : vector<2x128xi32>
    %146 = arith.select %145, %142, %140 : vector<2x128xi1>, vector<2x128xf32>
    %c0_72 = arith.constant 0 : index
    %c5_73 = arith.constant 5 : index
    %c0_74 = arith.constant 0 : index
    %c0_75 = arith.constant 0 : index
    %147 = vector.load %arg3[%c0_72, %c5_73, %c0_74, %c0_75] : memref<1x21x2x128xf32, #tpu.memory_space<vmem>>, vector<1x1x2x128xf32>
    %148 = vector.shape_cast %147 : vector<1x1x2x128xf32> to vector<2x128xf32>
    %149 = arith.maximumf %143, %148 : vector<2x128xf32>
    %c5_i32 = arith.constant 5 : i32
    %150 = vector.broadcast %c5_i32 : i32 to vector<2x128xi32>
    %151 = arith.cmpi eq, %14, %150 : vector<2x128xi32>
    %152 = arith.select %151, %148, %146 : vector<2x128xi1>, vector<2x128xf32>
    %c0_76 = arith.constant 0 : index
    %c6_77 = arith.constant 6 : index
    %c0_78 = arith.constant 0 : index
    %c0_79 = arith.constant 0 : index
    %153 = vector.load %arg3[%c0_76, %c6_77, %c0_78, %c0_79] : memref<1x21x2x128xf32, #tpu.memory_space<vmem>>, vector<1x1x2x128xf32>
    %154 = vector.shape_cast %153 : vector<1x1x2x128xf32> to vector<2x128xf32>
    %155 = arith.maximumf %149, %154 : vector<2x128xf32>
    %c6_i32 = arith.constant 6 : i32
    %156 = vector.broadcast %c6_i32 : i32 to vector<2x128xi32>
    %157 = arith.cmpi eq, %14, %156 : vector<2x128xi32>
    %158 = arith.select %157, %154, %152 : vector<2x128xi1>, vector<2x128xf32>
    %c0_80 = arith.constant 0 : index
    %c7_81 = arith.constant 7 : index
    %c0_82 = arith.constant 0 : index
    %c0_83 = arith.constant 0 : index
    %159 = vector.load %arg3[%c0_80, %c7_81, %c0_82, %c0_83] : memref<1x21x2x128xf32, #tpu.memory_space<vmem>>, vector<1x1x2x128xf32>
    %160 = vector.shape_cast %159 : vector<1x1x2x128xf32> to vector<2x128xf32>
    %161 = arith.maximumf %155, %160 : vector<2x128xf32>
    %c7_i32 = arith.constant 7 : i32
    %162 = vector.broadcast %c7_i32 : i32 to vector<2x128xi32>
    %163 = arith.cmpi eq, %14, %162 : vector<2x128xi32>
    %164 = arith.select %163, %160, %158 : vector<2x128xi1>, vector<2x128xf32>
    %c0_84 = arith.constant 0 : index
    %c8_85 = arith.constant 8 : index
    %c0_86 = arith.constant 0 : index
    %c0_87 = arith.constant 0 : index
    %165 = vector.load %arg3[%c0_84, %c8_85, %c0_86, %c0_87] : memref<1x21x2x128xf32, #tpu.memory_space<vmem>>, vector<1x1x2x128xf32>
    %166 = vector.shape_cast %165 : vector<1x1x2x128xf32> to vector<2x128xf32>
    %167 = arith.maximumf %161, %166 : vector<2x128xf32>
    %c8_i32_88 = arith.constant 8 : i32
    %168 = vector.broadcast %c8_i32_88 : i32 to vector<2x128xi32>
    %169 = arith.cmpi eq, %14, %168 : vector<2x128xi32>
    %170 = arith.select %169, %166, %164 : vector<2x128xi1>, vector<2x128xf32>
    %c0_89 = arith.constant 0 : index
    %c9 = arith.constant 9 : index
    %c0_90 = arith.constant 0 : index
    %c0_91 = arith.constant 0 : index
    %171 = vector.load %arg3[%c0_89, %c9, %c0_90, %c0_91] : memref<1x21x2x128xf32, #tpu.memory_space<vmem>>, vector<1x1x2x128xf32>
    %172 = vector.shape_cast %171 : vector<1x1x2x128xf32> to vector<2x128xf32>
    %173 = arith.maximumf %167, %172 : vector<2x128xf32>
    %c9_i32 = arith.constant 9 : i32
    %174 = vector.broadcast %c9_i32 : i32 to vector<2x128xi32>
    %175 = arith.cmpi eq, %14, %174 : vector<2x128xi32>
    %176 = arith.select %175, %172, %170 : vector<2x128xi1>, vector<2x128xf32>
    %c0_92 = arith.constant 0 : index
    %c10 = arith.constant 10 : index
    %c0_93 = arith.constant 0 : index
    %c0_94 = arith.constant 0 : index
    %177 = vector.load %arg3[%c0_92, %c10, %c0_93, %c0_94] : memref<1x21x2x128xf32, #tpu.memory_space<vmem>>, vector<1x1x2x128xf32>
    %178 = vector.shape_cast %177 : vector<1x1x2x128xf32> to vector<2x128xf32>
    %179 = arith.maximumf %173, %178 : vector<2x128xf32>
    %c10_i32 = arith.constant 10 : i32
    %180 = vector.broadcast %c10_i32 : i32 to vector<2x128xi32>
    %181 = arith.cmpi eq, %14, %180 : vector<2x128xi32>
    %182 = arith.select %181, %178, %176 : vector<2x128xi1>, vector<2x128xf32>
    %c0_95 = arith.constant 0 : index
    %c11 = arith.constant 11 : index
    %c0_96 = arith.constant 0 : index
    %c0_97 = arith.constant 0 : index
    %183 = vector.load %arg3[%c0_95, %c11, %c0_96, %c0_97] : memref<1x21x2x128xf32, #tpu.memory_space<vmem>>, vector<1x1x2x128xf32>
    %184 = vector.shape_cast %183 : vector<1x1x2x128xf32> to vector<2x128xf32>
    %185 = arith.maximumf %179, %184 : vector<2x128xf32>
    %c11_i32 = arith.constant 11 : i32
    %186 = vector.broadcast %c11_i32 : i32 to vector<2x128xi32>
    %187 = arith.cmpi eq, %14, %186 : vector<2x128xi32>
    %188 = arith.select %187, %184, %182 : vector<2x128xi1>, vector<2x128xf32>
    %c0_98 = arith.constant 0 : index
    %c12 = arith.constant 12 : index
    %c0_99 = arith.constant 0 : index
    %c0_100 = arith.constant 0 : index
    %189 = vector.load %arg3[%c0_98, %c12, %c0_99, %c0_100] : memref<1x21x2x128xf32, #tpu.memory_space<vmem>>, vector<1x1x2x128xf32>
    %190 = vector.shape_cast %189 : vector<1x1x2x128xf32> to vector<2x128xf32>
    %191 = arith.maximumf %185, %190 : vector<2x128xf32>
    %c12_i32 = arith.constant 12 : i32
    %192 = vector.broadcast %c12_i32 : i32 to vector<2x128xi32>
    %193 = arith.cmpi eq, %14, %192 : vector<2x128xi32>
    %194 = arith.select %193, %190, %188 : vector<2x128xi1>, vector<2x128xf32>
    %c0_101 = arith.constant 0 : index
    %c13 = arith.constant 13 : index
    %c0_102 = arith.constant 0 : index
    %c0_103 = arith.constant 0 : index
    %195 = vector.load %arg3[%c0_101, %c13, %c0_102, %c0_103] : memref<1x21x2x128xf32, #tpu.memory_space<vmem>>, vector<1x1x2x128xf32>
    %196 = vector.shape_cast %195 : vector<1x1x2x128xf32> to vector<2x128xf32>
    %197 = arith.maximumf %191, %196 : vector<2x128xf32>
    %c13_i32 = arith.constant 13 : i32
    %198 = vector.broadcast %c13_i32 : i32 to vector<2x128xi32>
    %199 = arith.cmpi eq, %14, %198 : vector<2x128xi32>
    %200 = arith.select %199, %196, %194 : vector<2x128xi1>, vector<2x128xf32>
    %c0_104 = arith.constant 0 : index
    %c14 = arith.constant 14 : index
    %c0_105 = arith.constant 0 : index
    %c0_106 = arith.constant 0 : index
    %201 = vector.load %arg3[%c0_104, %c14, %c0_105, %c0_106] : memref<1x21x2x128xf32, #tpu.memory_space<vmem>>, vector<1x1x2x128xf32>
    %202 = vector.shape_cast %201 : vector<1x1x2x128xf32> to vector<2x128xf32>
    %203 = arith.maximumf %197, %202 : vector<2x128xf32>
    %c14_i32 = arith.constant 14 : i32
    %204 = vector.broadcast %c14_i32 : i32 to vector<2x128xi32>
    %205 = arith.cmpi eq, %14, %204 : vector<2x128xi32>
    %206 = arith.select %205, %202, %200 : vector<2x128xi1>, vector<2x128xf32>
    %c0_107 = arith.constant 0 : index
    %c15 = arith.constant 15 : index
    %c0_108 = arith.constant 0 : index
    %c0_109 = arith.constant 0 : index
    %207 = vector.load %arg3[%c0_107, %c15, %c0_108, %c0_109] : memref<1x21x2x128xf32, #tpu.memory_space<vmem>>, vector<1x1x2x128xf32>
    %208 = vector.shape_cast %207 : vector<1x1x2x128xf32> to vector<2x128xf32>
    %209 = arith.maximumf %203, %208 : vector<2x128xf32>
    %c15_i32 = arith.constant 15 : i32
    %210 = vector.broadcast %c15_i32 : i32 to vector<2x128xi32>
    %211 = arith.cmpi eq, %14, %210 : vector<2x128xi32>
    %212 = arith.select %211, %208, %206 : vector<2x128xi1>, vector<2x128xf32>
    %c0_110 = arith.constant 0 : index
    %c16 = arith.constant 16 : index
    %c0_111 = arith.constant 0 : index
    %c0_112 = arith.constant 0 : index
    %213 = vector.load %arg3[%c0_110, %c16, %c0_111, %c0_112] : memref<1x21x2x128xf32, #tpu.memory_space<vmem>>, vector<1x1x2x128xf32>
    %214 = vector.shape_cast %213 : vector<1x1x2x128xf32> to vector<2x128xf32>
    %215 = arith.maximumf %209, %214 : vector<2x128xf32>
    %c16_i32 = arith.constant 16 : i32
    %216 = vector.broadcast %c16_i32 : i32 to vector<2x128xi32>
    %217 = arith.cmpi eq, %14, %216 : vector<2x128xi32>
    %218 = arith.select %217, %214, %212 : vector<2x128xi1>, vector<2x128xf32>
    %c0_113 = arith.constant 0 : index
    %c17 = arith.constant 17 : index
    %c0_114 = arith.constant 0 : index
    %c0_115 = arith.constant 0 : index
    %219 = vector.load %arg3[%c0_113, %c17, %c0_114, %c0_115] : memref<1x21x2x128xf32, #tpu.memory_space<vmem>>, vector<1x1x2x128xf32>
    %220 = vector.shape_cast %219 : vector<1x1x2x128xf32> to vector<2x128xf32>
    %221 = arith.maximumf %215, %220 : vector<2x128xf32>
    %c17_i32 = arith.constant 17 : i32
    %222 = vector.broadcast %c17_i32 : i32 to vector<2x128xi32>
    %223 = arith.cmpi eq, %14, %222 : vector<2x128xi32>
    %224 = arith.select %223, %220, %218 : vector<2x128xi1>, vector<2x128xf32>
    %c0_116 = arith.constant 0 : index
    %c18 = arith.constant 18 : index
    %c0_117 = arith.constant 0 : index
    %c0_118 = arith.constant 0 : index
    %225 = vector.load %arg3[%c0_116, %c18, %c0_117, %c0_118] : memref<1x21x2x128xf32, #tpu.memory_space<vmem>>, vector<1x1x2x128xf32>
    %226 = vector.shape_cast %225 : vector<1x1x2x128xf32> to vector<2x128xf32>
    %227 = arith.maximumf %221, %226 : vector<2x128xf32>
    %c18_i32 = arith.constant 18 : i32
    %228 = vector.broadcast %c18_i32 : i32 to vector<2x128xi32>
    %229 = arith.cmpi eq, %14, %228 : vector<2x128xi32>
    %230 = arith.select %229, %226, %224 : vector<2x128xi1>, vector<2x128xf32>
    %c0_119 = arith.constant 0 : index
    %c19 = arith.constant 19 : index
    %c0_120 = arith.constant 0 : index
    %c0_121 = arith.constant 0 : index
    %231 = vector.load %arg3[%c0_119, %c19, %c0_120, %c0_121] : memref<1x21x2x128xf32, #tpu.memory_space<vmem>>, vector<1x1x2x128xf32>
    %232 = vector.shape_cast %231 : vector<1x1x2x128xf32> to vector<2x128xf32>
    %233 = arith.maximumf %227, %232 : vector<2x128xf32>
    %c19_i32 = arith.constant 19 : i32
    %234 = vector.broadcast %c19_i32 : i32 to vector<2x128xi32>
    %235 = arith.cmpi eq, %14, %234 : vector<2x128xi32>
    %236 = arith.select %235, %232, %230 : vector<2x128xi1>, vector<2x128xf32>
    %c0_122 = arith.constant 0 : index
    %c20 = arith.constant 20 : index
    %c0_123 = arith.constant 0 : index
    %c0_124 = arith.constant 0 : index
    %237 = vector.load %arg3[%c0_122, %c20, %c0_123, %c0_124] : memref<1x21x2x128xf32, #tpu.memory_space<vmem>>, vector<1x1x2x128xf32>
    %238 = vector.shape_cast %237 : vector<1x1x2x128xf32> to vector<2x128xf32>
    %239 = arith.maximumf %233, %238 : vector<2x128xf32>
    %c20_i32 = arith.constant 20 : i32
    %240 = vector.broadcast %c20_i32 : i32 to vector<2x128xi32>
    %241 = arith.cmpi eq, %14, %240 : vector<2x128xi32>
    %242 = arith.select %241, %238, %236 : vector<2x128xi1>, vector<2x128xf32>
    %243 = arith.subf %119, %239 : vector<2x128xf32>
    %244 = math.exp %243 : vector<2x128xf32>
    %c0_125 = arith.constant 0 : index
    %c1_126 = arith.constant 1 : index
    %c0_127 = arith.constant 0 : index
    %c0_128 = arith.constant 0 : index
    %245 = vector.load %arg3[%c0_125, %c1_126, %c0_127, %c0_128] : memref<1x21x2x128xf32, #tpu.memory_space<vmem>>, vector<1x1x2x128xf32>
    %246 = vector.shape_cast %245 : vector<1x1x2x128xf32> to vector<2x128xf32>
    %247 = arith.subf %246, %239 : vector<2x128xf32>
    %248 = math.exp %247 : vector<2x128xf32>
    %249 = arith.addf %244, %248 : vector<2x128xf32>
    %c0_129 = arith.constant 0 : index
    %c2_130 = arith.constant 2 : index
    %c0_131 = arith.constant 0 : index
    %c0_132 = arith.constant 0 : index
    %250 = vector.load %arg3[%c0_129, %c2_130, %c0_131, %c0_132] : memref<1x21x2x128xf32, #tpu.memory_space<vmem>>, vector<1x1x2x128xf32>
    %251 = vector.shape_cast %250 : vector<1x1x2x128xf32> to vector<2x128xf32>
    %252 = arith.subf %251, %239 : vector<2x128xf32>
    %253 = math.exp %252 : vector<2x128xf32>
    %254 = arith.addf %249, %253 : vector<2x128xf32>
    %c0_133 = arith.constant 0 : index
    %c3_134 = arith.constant 3 : index
    %c0_135 = arith.constant 0 : index
    %c0_136 = arith.constant 0 : index
    %255 = vector.load %arg3[%c0_133, %c3_134, %c0_135, %c0_136] : memref<1x21x2x128xf32, #tpu.memory_space<vmem>>, vector<1x1x2x128xf32>
    %256 = vector.shape_cast %255 : vector<1x1x2x128xf32> to vector<2x128xf32>
    %257 = arith.subf %256, %239 : vector<2x128xf32>
    %258 = math.exp %257 : vector<2x128xf32>
    %259 = arith.addf %254, %258 : vector<2x128xf32>
    %c0_137 = arith.constant 0 : index
    %c4_138 = arith.constant 4 : index
    %c0_139 = arith.constant 0 : index
    %c0_140 = arith.constant 0 : index
    %260 = vector.load %arg3[%c0_137, %c4_138, %c0_139, %c0_140] : memref<1x21x2x128xf32, #tpu.memory_space<vmem>>, vector<1x1x2x128xf32>
    %261 = vector.shape_cast %260 : vector<1x1x2x128xf32> to vector<2x128xf32>
    %262 = arith.subf %261, %239 : vector<2x128xf32>
    %263 = math.exp %262 : vector<2x128xf32>
    %264 = arith.addf %259, %263 : vector<2x128xf32>
    %c0_141 = arith.constant 0 : index
    %c5_142 = arith.constant 5 : index
    %c0_143 = arith.constant 0 : index
    %c0_144 = arith.constant 0 : index
    %265 = vector.load %arg3[%c0_141, %c5_142, %c0_143, %c0_144] : memref<1x21x2x128xf32, #tpu.memory_space<vmem>>, vector<1x1x2x128xf32>
    %266 = vector.shape_cast %265 : vector<1x1x2x128xf32> to vector<2x128xf32>
    %267 = arith.subf %266, %239 : vector<2x128xf32>
    %268 = math.exp %267 : vector<2x128xf32>
    %269 = arith.addf %264, %268 : vector<2x128xf32>
    %c0_145 = arith.constant 0 : index
    %c6_146 = arith.constant 6 : index
    %c0_147 = arith.constant 0 : index
    %c0_148 = arith.constant 0 : index
    %270 = vector.load %arg3[%c0_145, %c6_146, %c0_147, %c0_148] : memref<1x21x2x128xf32, #tpu.memory_space<vmem>>, vector<1x1x2x128xf32>
    %271 = vector.shape_cast %270 : vector<1x1x2x128xf32> to vector<2x128xf32>
    %272 = arith.subf %271, %239 : vector<2x128xf32>
    %273 = math.exp %272 : vector<2x128xf32>
    %274 = arith.addf %269, %273 : vector<2x128xf32>
    %c0_149 = arith.constant 0 : index
    %c7_150 = arith.constant 7 : index
    %c0_151 = arith.constant 0 : index
    %c0_152 = arith.constant 0 : index
    %275 = vector.load %arg3[%c0_149, %c7_150, %c0_151, %c0_152] : memref<1x21x2x128xf32, #tpu.memory_space<vmem>>, vector<1x1x2x128xf32>
    %276 = vector.shape_cast %275 : vector<1x1x2x128xf32> to vector<2x128xf32>
    %277 = arith.subf %276, %239 : vector<2x128xf32>
    %278 = math.exp %277 : vector<2x128xf32>
    %279 = arith.addf %274, %278 : vector<2x128xf32>
    %c0_153 = arith.constant 0 : index
    %c8_154 = arith.constant 8 : index
    %c0_155 = arith.constant 0 : index
    %c0_156 = arith.constant 0 : index
    %280 = vector.load %arg3[%c0_153, %c8_154, %c0_155, %c0_156] : memref<1x21x2x128xf32, #tpu.memory_space<vmem>>, vector<1x1x2x128xf32>
    %281 = vector.shape_cast %280 : vector<1x1x2x128xf32> to vector<2x128xf32>
    %282 = arith.subf %281, %239 : vector<2x128xf32>
    %283 = math.exp %282 : vector<2x128xf32>
    %284 = arith.addf %279, %283 : vector<2x128xf32>
    %c0_157 = arith.constant 0 : index
    %c9_158 = arith.constant 9 : index
    %c0_159 = arith.constant 0 : index
    %c0_160 = arith.constant 0 : index
    %285 = vector.load %arg3[%c0_157, %c9_158, %c0_159, %c0_160] : memref<1x21x2x128xf32, #tpu.memory_space<vmem>>, vector<1x1x2x128xf32>
    %286 = vector.shape_cast %285 : vector<1x1x2x128xf32> to vector<2x128xf32>
    %287 = arith.subf %286, %239 : vector<2x128xf32>
    %288 = math.exp %287 : vector<2x128xf32>
    %289 = arith.addf %284, %288 : vector<2x128xf32>
    %c0_161 = arith.constant 0 : index
    %c10_162 = arith.constant 10 : index
    %c0_163 = arith.constant 0 : index
    %c0_164 = arith.constant 0 : index
    %290 = vector.load %arg3[%c0_161, %c10_162, %c0_163, %c0_164] : memref<1x21x2x128xf32, #tpu.memory_space<vmem>>, vector<1x1x2x128xf32>
    %291 = vector.shape_cast %290 : vector<1x1x2x128xf32> to vector<2x128xf32>
    %292 = arith.subf %291, %239 : vector<2x128xf32>
    %293 = math.exp %292 : vector<2x128xf32>
    %294 = arith.addf %289, %293 : vector<2x128xf32>
    %c0_165 = arith.constant 0 : index
    %c11_166 = arith.constant 11 : index
    %c0_167 = arith.constant 0 : index
    %c0_168 = arith.constant 0 : index
    %295 = vector.load %arg3[%c0_165, %c11_166, %c0_167, %c0_168] : memref<1x21x2x128xf32, #tpu.memory_space<vmem>>, vector<1x1x2x128xf32>
    %296 = vector.shape_cast %295 : vector<1x1x2x128xf32> to vector<2x128xf32>
    %297 = arith.subf %296, %239 : vector<2x128xf32>
    %298 = math.exp %297 : vector<2x128xf32>
    %299 = arith.addf %294, %298 : vector<2x128xf32>
    %c0_169 = arith.constant 0 : index
    %c12_170 = arith.constant 12 : index
    %c0_171 = arith.constant 0 : index
    %c0_172 = arith.constant 0 : index
    %300 = vector.load %arg3[%c0_169, %c12_170, %c0_171, %c0_172] : memref<1x21x2x128xf32, #tpu.memory_space<vmem>>, vector<1x1x2x128xf32>
    %301 = vector.shape_cast %300 : vector<1x1x2x128xf32> to vector<2x128xf32>
    %302 = arith.subf %301, %239 : vector<2x128xf32>
    %303 = math.exp %302 : vector<2x128xf32>
    %304 = arith.addf %299, %303 : vector<2x128xf32>
    %c0_173 = arith.constant 0 : index
    %c13_174 = arith.constant 13 : index
    %c0_175 = arith.constant 0 : index
    %c0_176 = arith.constant 0 : index
    %305 = vector.load %arg3[%c0_173, %c13_174, %c0_175, %c0_176] : memref<1x21x2x128xf32, #tpu.memory_space<vmem>>, vector<1x1x2x128xf32>
    %306 = vector.shape_cast %305 : vector<1x1x2x128xf32> to vector<2x128xf32>
    %307 = arith.subf %306, %239 : vector<2x128xf32>
    %308 = math.exp %307 : vector<2x128xf32>
    %309 = arith.addf %304, %308 : vector<2x128xf32>
    %c0_177 = arith.constant 0 : index
    %c14_178 = arith.constant 14 : index
    %c0_179 = arith.constant 0 : index
    %c0_180 = arith.constant 0 : index
    %310 = vector.load %arg3[%c0_177, %c14_178, %c0_179, %c0_180] : memref<1x21x2x128xf32, #tpu.memory_space<vmem>>, vector<1x1x2x128xf32>
    %311 = vector.shape_cast %310 : vector<1x1x2x128xf32> to vector<2x128xf32>
    %312 = arith.subf %311, %239 : vector<2x128xf32>
    %313 = math.exp %312 : vector<2x128xf32>
    %314 = arith.addf %309, %313 : vector<2x128xf32>
    %c0_181 = arith.constant 0 : index
    %c15_182 = arith.constant 15 : index
    %c0_183 = arith.constant 0 : index
    %c0_184 = arith.constant 0 : index
    %315 = vector.load %arg3[%c0_181, %c15_182, %c0_183, %c0_184] : memref<1x21x2x128xf32, #tpu.memory_space<vmem>>, vector<1x1x2x128xf32>
    %316 = vector.shape_cast %315 : vector<1x1x2x128xf32> to vector<2x128xf32>
    %317 = arith.subf %316, %239 : vector<2x128xf32>
    %318 = math.exp %317 : vector<2x128xf32>
    %319 = arith.addf %314, %318 : vector<2x128xf32>
    %c0_185 = arith.constant 0 : index
    %c16_186 = arith.constant 16 : index
    %c0_187 = arith.constant 0 : index
    %c0_188 = arith.constant 0 : index
    %320 = vector.load %arg3[%c0_185, %c16_186, %c0_187, %c0_188] : memref<1x21x2x128xf32, #tpu.memory_space<vmem>>, vector<1x1x2x128xf32>
    %321 = vector.shape_cast %320 : vector<1x1x2x128xf32> to vector<2x128xf32>
    %322 = arith.subf %321, %239 : vector<2x128xf32>
    %323 = math.exp %322 : vector<2x128xf32>
    %324 = arith.addf %319, %323 : vector<2x128xf32>
    %c0_189 = arith.constant 0 : index
    %c17_190 = arith.constant 17 : index
    %c0_191 = arith.constant 0 : index
    %c0_192 = arith.constant 0 : index
    %325 = vector.load %arg3[%c0_189, %c17_190, %c0_191, %c0_192] : memref<1x21x2x128xf32, #tpu.memory_space<vmem>>, vector<1x1x2x128xf32>
    %326 = vector.shape_cast %325 : vector<1x1x2x128xf32> to vector<2x128xf32>
    %327 = arith.subf %326, %239 : vector<2x128xf32>
    %328 = math.exp %327 : vector<2x128xf32>
    %329 = arith.addf %324, %328 : vector<2x128xf32>
    %c0_193 = arith.constant 0 : index
    %c18_194 = arith.constant 18 : index
    %c0_195 = arith.constant 0 : index
    %c0_196 = arith.constant 0 : index
    %330 = vector.load %arg3[%c0_193, %c18_194, %c0_195, %c0_196] : memref<1x21x2x128xf32, #tpu.memory_space<vmem>>, vector<1x1x2x128xf32>
    %331 = vector.shape_cast %330 : vector<1x1x2x128xf32> to vector<2x128xf32>
    %332 = arith.subf %331, %239 : vector<2x128xf32>
    %333 = math.exp %332 : vector<2x128xf32>
    %334 = arith.addf %329, %333 : vector<2x128xf32>
    %c0_197 = arith.constant 0 : index
    %c19_198 = arith.constant 19 : index
    %c0_199 = arith.constant 0 : index
    %c0_200 = arith.constant 0 : index
    %335 = vector.load %arg3[%c0_197, %c19_198, %c0_199, %c0_200] : memref<1x21x2x128xf32, #tpu.memory_space<vmem>>, vector<1x1x2x128xf32>
    %336 = vector.shape_cast %335 : vector<1x1x2x128xf32> to vector<2x128xf32>
    %337 = arith.subf %336, %239 : vector<2x128xf32>
    %338 = math.exp %337 : vector<2x128xf32>
    %339 = arith.addf %334, %338 : vector<2x128xf32>
    %c0_201 = arith.constant 0 : index
    %c20_202 = arith.constant 20 : index
    %c0_203 = arith.constant 0 : index
    %c0_204 = arith.constant 0 : index
    %340 = vector.load %arg3[%c0_201, %c20_202, %c0_203, %c0_204] : memref<1x21x2x128xf32, #tpu.memory_space<vmem>>, vector<1x1x2x128xf32>
    %341 = vector.shape_cast %340 : vector<1x1x2x128xf32> to vector<2x128xf32>
    %342 = arith.subf %341, %239 : vector<2x128xf32>
    %343 = math.exp %342 : vector<2x128xf32>
    %344 = arith.addf %339, %343 : vector<2x128xf32>
    %345 = math.log %344 : vector<2x128xf32>
    %346 = arith.addf %345, %239 : vector<2x128xf32>
    %347 = arith.subf %346, %242 : vector<2x128xf32>
    %cst_205 = arith.constant 0.000000e+00 : f32
    %348 = vector.broadcast %cst_205 : f32 to vector<2x128xf32>
    %349 = arith.select %17, %347, %348 : vector<2x128xi1>, vector<2x128xf32>
    %cst_206 = arith.constant dense<0.000000e+00> : vector<2xf32>
    %350 = vector.multi_reduction <add>, %349, %cst_206 [1] : vector<2x128xf32> to vector<2xf32>
    %351 = vector.shape_cast %350 : vector<2xf32> to vector<2x1xf32>
    %cst_207 = arith.constant dense<0.000000e+00> : vector<1xf32>
    %352 = vector.multi_reduction <add>, %351, %cst_207 [0] : vector<2x1xf32> to vector<1xf32>
    %353 = vector.shape_cast %352 : vector<1xf32> to vector<1x1xf32>
    %cst_208 = arith.constant dense<true> : vector<2x128xi1>
    %354 = arith.xori %6, %cst_208 : vector<2x128xi1>
    %355 = arith.ori %17, %354 : vector<2x128xi1>
    %cst_209 = arith.constant 0.000000e+00 : f32
    %356 = vector.broadcast %cst_209 : f32 to vector<2x128xf32>
    %357 = arith.select %355, %356, %347 : vector<2x128xi1>, vector<2x128xf32>
    %cst_210 = arith.constant 3.000000e+00 : f32
    %358 = vector.broadcast %cst_210 : f32 to vector<1x1xf32>
    %359 = arith.mulf %358, %24 : vector<1x1xf32>
    %cst_211 = arith.constant 2.560000e+02 : f32
    %360 = vector.broadcast %cst_211 : f32 to vector<1x1xf32>
    %361 = arith.minimumf %359, %360 : vector<1x1xf32>
    %cst_212 = arith.constant 0.000000e+00 : f32
    %362 = vector.broadcast %cst_212 : f32 to vector<1x1xf32>
    %cst_213 = arith.constant dense<0xFF800000> : vector<2xf32>
    %363 = vector.multi_reduction <maximumf>, %357, %cst_213 [1] : vector<2x128xf32> to vector<2xf32>
    %364 = vector.shape_cast %363 : vector<2xf32> to vector<2x1xf32>
    %cst_214 = arith.constant dense<0xFF800000> : vector<1xf32>
    %365 = vector.multi_reduction <maximumf>, %364, %cst_214 [0] : vector<2x1xf32> to vector<1xf32>
    %366 = vector.shape_cast %365 : vector<1xf32> to vector<1x1xf32>
    %cst_215 = arith.constant 1.000000e+00 : f32
    %367 = vector.broadcast %cst_215 : f32 to vector<1x1xf32>
    %368 = arith.addf %366, %367 : vector<1x1xf32>
    %369 = arith.addf %362, %368 : vector<1x1xf32>
    %cst_216 = arith.constant 5.000000e-01 : f32
    %370 = vector.broadcast %cst_216 : f32 to vector<1x1xf32>
    %371 = arith.mulf %369, %370 : vector<1x1xf32>
    %372 = vector.broadcast %371 : vector<1x1xf32> to vector<2x128xf32>
    %373 = arith.cmpf oge, %357, %372 : vector<2x128xf32>
    %cst_217 = arith.constant 1.000000e+00 : f32
    %cst_218 = arith.constant 0.000000e+00 : f32
    %374 = vector.broadcast %cst_217 : f32 to vector<2x128xf32>
    %375 = vector.broadcast %cst_218 : f32 to vector<2x128xf32>
    %376 = arith.select %373, %374, %375 : vector<2x128xi1>, vector<2x128xf32>
    %cst_219 = arith.constant dense<0.000000e+00> : vector<2xf32>
    %377 = vector.multi_reduction <add>, %376, %cst_219 [1] : vector<2x128xf32> to vector<2xf32>
    %378 = vector.shape_cast %377 : vector<2xf32> to vector<2x1xf32>
    %cst_220 = arith.constant dense<0.000000e+00> : vector<1xf32>
    %379 = vector.multi_reduction <add>, %378, %cst_220 [0] : vector<2x1xf32> to vector<1xf32>
    %380 = vector.shape_cast %379 : vector<1xf32> to vector<1x1xf32>
    %381 = arith.cmpf oge, %380, %361 : vector<1x1xf32>
    %382 = arith.select %381, %371, %362 : vector<1x1xi1>, vector<1x1xf32>
    %383 = arith.select %381, %368, %371 : vector<1x1xi1>, vector<1x1xf32>
    %384 = arith.addf %382, %383 : vector<1x1xf32>
    %cst_221 = arith.constant 5.000000e-01 : f32
    %385 = vector.broadcast %cst_221 : f32 to vector<1x1xf32>
    %386 = arith.mulf %384, %385 : vector<1x1xf32>
    %387 = vector.broadcast %386 : vector<1x1xf32> to vector<2x128xf32>
    %388 = arith.cmpf oge, %357, %387 : vector<2x128xf32>
    %cst_222 = arith.constant 1.000000e+00 : f32
    %cst_223 = arith.constant 0.000000e+00 : f32
    %389 = vector.broadcast %cst_222 : f32 to vector<2x128xf32>
    %390 = vector.broadcast %cst_223 : f32 to vector<2x128xf32>
    %391 = arith.select %388, %389, %390 : vector<2x128xi1>, vector<2x128xf32>
    %cst_224 = arith.constant dense<0.000000e+00> : vector<2xf32>
    %392 = vector.multi_reduction <add>, %391, %cst_224 [1] : vector<2x128xf32> to vector<2xf32>
    %393 = vector.shape_cast %392 : vector<2xf32> to vector<2x1xf32>
    %cst_225 = arith.constant dense<0.000000e+00> : vector<1xf32>
    %394 = vector.multi_reduction <add>, %393, %cst_225 [0] : vector<2x1xf32> to vector<1xf32>
    %395 = vector.shape_cast %394 : vector<1xf32> to vector<1x1xf32>
    %396 = arith.cmpf oge, %395, %361 : vector<1x1xf32>
    %397 = arith.select %396, %386, %382 : vector<1x1xi1>, vector<1x1xf32>
    %398 = arith.select %396, %383, %386 : vector<1x1xi1>, vector<1x1xf32>
    %399 = arith.addf %397, %398 : vector<1x1xf32>
    %cst_226 = arith.constant 5.000000e-01 : f32
    %400 = vector.broadcast %cst_226 : f32 to vector<1x1xf32>
    %401 = arith.mulf %399, %400 : vector<1x1xf32>
    %402 = vector.broadcast %401 : vector<1x1xf32> to vector<2x128xf32>
    %403 = arith.cmpf oge, %357, %402 : vector<2x128xf32>
    %cst_227 = arith.constant 1.000000e+00 : f32
    %cst_228 = arith.constant 0.000000e+00 : f32
    %404 = vector.broadcast %cst_227 : f32 to vector<2x128xf32>
    %405 = vector.broadcast %cst_228 : f32 to vector<2x128xf32>
    %406 = arith.select %403, %404, %405 : vector<2x128xi1>, vector<2x128xf32>
    %cst_229 = arith.constant dense<0.000000e+00> : vector<2xf32>
    %407 = vector.multi_reduction <add>, %406, %cst_229 [1] : vector<2x128xf32> to vector<2xf32>
    %408 = vector.shape_cast %407 : vector<2xf32> to vector<2x1xf32>
    %cst_230 = arith.constant dense<0.000000e+00> : vector<1xf32>
    %409 = vector.multi_reduction <add>, %408, %cst_230 [0] : vector<2x1xf32> to vector<1xf32>
    %410 = vector.shape_cast %409 : vector<1xf32> to vector<1x1xf32>
    %411 = arith.cmpf oge, %410, %361 : vector<1x1xf32>
    %412 = arith.select %411, %401, %397 : vector<1x1xi1>, vector<1x1xf32>
    %413 = arith.select %411, %398, %401 : vector<1x1xi1>, vector<1x1xf32>
    %414 = arith.addf %412, %413 : vector<1x1xf32>
    %cst_231 = arith.constant 5.000000e-01 : f32
    %415 = vector.broadcast %cst_231 : f32 to vector<1x1xf32>
    %416 = arith.mulf %414, %415 : vector<1x1xf32>
    %417 = vector.broadcast %416 : vector<1x1xf32> to vector<2x128xf32>
    %418 = arith.cmpf oge, %357, %417 : vector<2x128xf32>
    %cst_232 = arith.constant 1.000000e+00 : f32
    %cst_233 = arith.constant 0.000000e+00 : f32
    %419 = vector.broadcast %cst_232 : f32 to vector<2x128xf32>
    %420 = vector.broadcast %cst_233 : f32 to vector<2x128xf32>
    %421 = arith.select %418, %419, %420 : vector<2x128xi1>, vector<2x128xf32>
    %cst_234 = arith.constant dense<0.000000e+00> : vector<2xf32>
    %422 = vector.multi_reduction <add>, %421, %cst_234 [1] : vector<2x128xf32> to vector<2xf32>
    %423 = vector.shape_cast %422 : vector<2xf32> to vector<2x1xf32>
    %cst_235 = arith.constant dense<0.000000e+00> : vector<1xf32>
    %424 = vector.multi_reduction <add>, %423, %cst_235 [0] : vector<2x1xf32> to vector<1xf32>
    %425 = vector.shape_cast %424 : vector<1xf32> to vector<1x1xf32>
    %426 = arith.cmpf oge, %425, %361 : vector<1x1xf32>
    %427 = arith.select %426, %416, %412 : vector<1x1xi1>, vector<1x1xf32>
    %428 = arith.select %426, %413, %416 : vector<1x1xi1>, vector<1x1xf32>
    %429 = arith.addf %427, %428 : vector<1x1xf32>
    %cst_236 = arith.constant 5.000000e-01 : f32
    %430 = vector.broadcast %cst_236 : f32 to vector<1x1xf32>
    %431 = arith.mulf %429, %430 : vector<1x1xf32>
    %432 = vector.broadcast %431 : vector<1x1xf32> to vector<2x128xf32>
    %433 = arith.cmpf oge, %357, %432 : vector<2x128xf32>
    %cst_237 = arith.constant 1.000000e+00 : f32
    %cst_238 = arith.constant 0.000000e+00 : f32
    %434 = vector.broadcast %cst_237 : f32 to vector<2x128xf32>
    %435 = vector.broadcast %cst_238 : f32 to vector<2x128xf32>
    %436 = arith.select %433, %434, %435 : vector<2x128xi1>, vector<2x128xf32>
    %cst_239 = arith.constant dense<0.000000e+00> : vector<2xf32>
    %437 = vector.multi_reduction <add>, %436, %cst_239 [1] : vector<2x128xf32> to vector<2xf32>
    %438 = vector.shape_cast %437 : vector<2xf32> to vector<2x1xf32>
    %cst_240 = arith.constant dense<0.000000e+00> : vector<1xf32>
    %439 = vector.multi_reduction <add>, %438, %cst_240 [0] : vector<2x1xf32> to vector<1xf32>
    %440 = vector.shape_cast %439 : vector<1xf32> to vector<1x1xf32>
    %441 = arith.cmpf oge, %440, %361 : vector<1x1xf32>
    %442 = arith.select %441, %431, %427 : vector<1x1xi1>, vector<1x1xf32>
    %443 = arith.select %441, %428, %431 : vector<1x1xi1>, vector<1x1xf32>
    %444 = arith.addf %442, %443 : vector<1x1xf32>
    %cst_241 = arith.constant 5.000000e-01 : f32
    %445 = vector.broadcast %cst_241 : f32 to vector<1x1xf32>
    %446 = arith.mulf %444, %445 : vector<1x1xf32>
    %447 = vector.broadcast %446 : vector<1x1xf32> to vector<2x128xf32>
    %448 = arith.cmpf oge, %357, %447 : vector<2x128xf32>
    %cst_242 = arith.constant 1.000000e+00 : f32
    %cst_243 = arith.constant 0.000000e+00 : f32
    %449 = vector.broadcast %cst_242 : f32 to vector<2x128xf32>
    %450 = vector.broadcast %cst_243 : f32 to vector<2x128xf32>
    %451 = arith.select %448, %449, %450 : vector<2x128xi1>, vector<2x128xf32>
    %cst_244 = arith.constant dense<0.000000e+00> : vector<2xf32>
    %452 = vector.multi_reduction <add>, %451, %cst_244 [1] : vector<2x128xf32> to vector<2xf32>
    %453 = vector.shape_cast %452 : vector<2xf32> to vector<2x1xf32>
    %cst_245 = arith.constant dense<0.000000e+00> : vector<1xf32>
    %454 = vector.multi_reduction <add>, %453, %cst_245 [0] : vector<2x1xf32> to vector<1xf32>
    %455 = vector.shape_cast %454 : vector<1xf32> to vector<1x1xf32>
    %456 = arith.cmpf oge, %455, %361 : vector<1x1xf32>
    %457 = arith.select %456, %446, %442 : vector<1x1xi1>, vector<1x1xf32>
    %458 = arith.select %456, %443, %446 : vector<1x1xi1>, vector<1x1xf32>
    %459 = arith.addf %457, %458 : vector<1x1xf32>
    %cst_246 = arith.constant 5.000000e-01 : f32
    %460 = vector.broadcast %cst_246 : f32 to vector<1x1xf32>
    %461 = arith.mulf %459, %460 : vector<1x1xf32>
    %462 = vector.broadcast %461 : vector<1x1xf32> to vector<2x128xf32>
    %463 = arith.cmpf oge, %357, %462 : vector<2x128xf32>
    %cst_247 = arith.constant 1.000000e+00 : f32
    %cst_248 = arith.constant 0.000000e+00 : f32
    %464 = vector.broadcast %cst_247 : f32 to vector<2x128xf32>
    %465 = vector.broadcast %cst_248 : f32 to vector<2x128xf32>
    %466 = arith.select %463, %464, %465 : vector<2x128xi1>, vector<2x128xf32>
    %cst_249 = arith.constant dense<0.000000e+00> : vector<2xf32>
    %467 = vector.multi_reduction <add>, %466, %cst_249 [1] : vector<2x128xf32> to vector<2xf32>
    %468 = vector.shape_cast %467 : vector<2xf32> to vector<2x1xf32>
    %cst_250 = arith.constant dense<0.000000e+00> : vector<1xf32>
    %469 = vector.multi_reduction <add>, %468, %cst_250 [0] : vector<2x1xf32> to vector<1xf32>
    %470 = vector.shape_cast %469 : vector<1xf32> to vector<1x1xf32>
    %471 = arith.cmpf oge, %470, %361 : vector<1x1xf32>
    %472 = arith.select %471, %461, %457 : vector<1x1xi1>, vector<1x1xf32>
    %473 = arith.select %471, %458, %461 : vector<1x1xi1>, vector<1x1xf32>
    %474 = arith.addf %472, %473 : vector<1x1xf32>
    %cst_251 = arith.constant 5.000000e-01 : f32
    %475 = vector.broadcast %cst_251 : f32 to vector<1x1xf32>
    %476 = arith.mulf %474, %475 : vector<1x1xf32>
    %477 = vector.broadcast %476 : vector<1x1xf32> to vector<2x128xf32>
    %478 = arith.cmpf oge, %357, %477 : vector<2x128xf32>
    %cst_252 = arith.constant 1.000000e+00 : f32
    %cst_253 = arith.constant 0.000000e+00 : f32
    %479 = vector.broadcast %cst_252 : f32 to vector<2x128xf32>
    %480 = vector.broadcast %cst_253 : f32 to vector<2x128xf32>
    %481 = arith.select %478, %479, %480 : vector<2x128xi1>, vector<2x128xf32>
    %cst_254 = arith.constant dense<0.000000e+00> : vector<2xf32>
    %482 = vector.multi_reduction <add>, %481, %cst_254 [1] : vector<2x128xf32> to vector<2xf32>
    %483 = vector.shape_cast %482 : vector<2xf32> to vector<2x1xf32>
    %cst_255 = arith.constant dense<0.000000e+00> : vector<1xf32>
    %484 = vector.multi_reduction <add>, %483, %cst_255 [0] : vector<2x1xf32> to vector<1xf32>
    %485 = vector.shape_cast %484 : vector<1xf32> to vector<1x1xf32>
    %486 = arith.cmpf oge, %485, %361 : vector<1x1xf32>
    %487 = arith.select %486, %476, %472 : vector<1x1xi1>, vector<1x1xf32>
    %488 = arith.select %486, %473, %476 : vector<1x1xi1>, vector<1x1xf32>
    %489 = arith.addf %487, %488 : vector<1x1xf32>
    %cst_256 = arith.constant 5.000000e-01 : f32
    %490 = vector.broadcast %cst_256 : f32 to vector<1x1xf32>
    %491 = arith.mulf %489, %490 : vector<1x1xf32>
    %492 = vector.broadcast %491 : vector<1x1xf32> to vector<2x128xf32>
    %493 = arith.cmpf oge, %357, %492 : vector<2x128xf32>
    %cst_257 = arith.constant 1.000000e+00 : f32
    %cst_258 = arith.constant 0.000000e+00 : f32
    %494 = vector.broadcast %cst_257 : f32 to vector<2x128xf32>
    %495 = vector.broadcast %cst_258 : f32 to vector<2x128xf32>
    %496 = arith.select %493, %494, %495 : vector<2x128xi1>, vector<2x128xf32>
    %cst_259 = arith.constant dense<0.000000e+00> : vector<2xf32>
    %497 = vector.multi_reduction <add>, %496, %cst_259 [1] : vector<2x128xf32> to vector<2xf32>
    %498 = vector.shape_cast %497 : vector<2xf32> to vector<2x1xf32>
    %cst_260 = arith.constant dense<0.000000e+00> : vector<1xf32>
    %499 = vector.multi_reduction <add>, %498, %cst_260 [0] : vector<2x1xf32> to vector<1xf32>
    %500 = vector.shape_cast %499 : vector<1xf32> to vector<1x1xf32>
    %501 = arith.cmpf oge, %500, %361 : vector<1x1xf32>
    %502 = arith.select %501, %491, %487 : vector<1x1xi1>, vector<1x1xf32>
    %503 = arith.select %501, %488, %491 : vector<1x1xi1>, vector<1x1xf32>
    %504 = arith.addf %502, %503 : vector<1x1xf32>
    %cst_261 = arith.constant 5.000000e-01 : f32
    %505 = vector.broadcast %cst_261 : f32 to vector<1x1xf32>
    %506 = arith.mulf %504, %505 : vector<1x1xf32>
    %507 = vector.broadcast %506 : vector<1x1xf32> to vector<2x128xf32>
    %508 = arith.cmpf oge, %357, %507 : vector<2x128xf32>
    %cst_262 = arith.constant 1.000000e+00 : f32
    %cst_263 = arith.constant 0.000000e+00 : f32
    %509 = vector.broadcast %cst_262 : f32 to vector<2x128xf32>
    %510 = vector.broadcast %cst_263 : f32 to vector<2x128xf32>
    %511 = arith.select %508, %509, %510 : vector<2x128xi1>, vector<2x128xf32>
    %cst_264 = arith.constant dense<0.000000e+00> : vector<2xf32>
    %512 = vector.multi_reduction <add>, %511, %cst_264 [1] : vector<2x128xf32> to vector<2xf32>
    %513 = vector.shape_cast %512 : vector<2xf32> to vector<2x1xf32>
    %cst_265 = arith.constant dense<0.000000e+00> : vector<1xf32>
    %514 = vector.multi_reduction <add>, %513, %cst_265 [0] : vector<2x1xf32> to vector<1xf32>
    %515 = vector.shape_cast %514 : vector<1xf32> to vector<1x1xf32>
    %516 = arith.cmpf oge, %515, %361 : vector<1x1xf32>
    %517 = arith.select %516, %506, %502 : vector<1x1xi1>, vector<1x1xf32>
    %518 = arith.select %516, %503, %506 : vector<1x1xi1>, vector<1x1xf32>
    %519 = arith.addf %517, %518 : vector<1x1xf32>
    %cst_266 = arith.constant 5.000000e-01 : f32
    %520 = vector.broadcast %cst_266 : f32 to vector<1x1xf32>
    %521 = arith.mulf %519, %520 : vector<1x1xf32>
    %522 = vector.broadcast %521 : vector<1x1xf32> to vector<2x128xf32>
    %523 = arith.cmpf oge, %357, %522 : vector<2x128xf32>
    %cst_267 = arith.constant 1.000000e+00 : f32
    %cst_268 = arith.constant 0.000000e+00 : f32
    %524 = vector.broadcast %cst_267 : f32 to vector<2x128xf32>
    %525 = vector.broadcast %cst_268 : f32 to vector<2x128xf32>
    %526 = arith.select %523, %524, %525 : vector<2x128xi1>, vector<2x128xf32>
    %cst_269 = arith.constant dense<0.000000e+00> : vector<2xf32>
    %527 = vector.multi_reduction <add>, %526, %cst_269 [1] : vector<2x128xf32> to vector<2xf32>
    %528 = vector.shape_cast %527 : vector<2xf32> to vector<2x1xf32>
    %cst_270 = arith.constant dense<0.000000e+00> : vector<1xf32>
    %529 = vector.multi_reduction <add>, %528, %cst_270 [0] : vector<2x1xf32> to vector<1xf32>
    %530 = vector.shape_cast %529 : vector<1xf32> to vector<1x1xf32>
    %531 = arith.cmpf oge, %530, %361 : vector<1x1xf32>
    %532 = arith.select %531, %521, %517 : vector<1x1xi1>, vector<1x1xf32>
    %533 = arith.select %531, %518, %521 : vector<1x1xi1>, vector<1x1xf32>
    %534 = arith.addf %532, %533 : vector<1x1xf32>
    %cst_271 = arith.constant 5.000000e-01 : f32
    %535 = vector.broadcast %cst_271 : f32 to vector<1x1xf32>
    %536 = arith.mulf %534, %535 : vector<1x1xf32>
    %537 = vector.broadcast %536 : vector<1x1xf32> to vector<2x128xf32>
    %538 = arith.cmpf oge, %357, %537 : vector<2x128xf32>
    %cst_272 = arith.constant 1.000000e+00 : f32
    %cst_273 = arith.constant 0.000000e+00 : f32
    %539 = vector.broadcast %cst_272 : f32 to vector<2x128xf32>
    %540 = vector.broadcast %cst_273 : f32 to vector<2x128xf32>
    %541 = arith.select %538, %539, %540 : vector<2x128xi1>, vector<2x128xf32>
    %cst_274 = arith.constant dense<0.000000e+00> : vector<2xf32>
    %542 = vector.multi_reduction <add>, %541, %cst_274 [1] : vector<2x128xf32> to vector<2xf32>
    %543 = vector.shape_cast %542 : vector<2xf32> to vector<2x1xf32>
    %cst_275 = arith.constant dense<0.000000e+00> : vector<1xf32>
    %544 = vector.multi_reduction <add>, %543, %cst_275 [0] : vector<2x1xf32> to vector<1xf32>
    %545 = vector.shape_cast %544 : vector<1xf32> to vector<1x1xf32>
    %546 = arith.cmpf oge, %545, %361 : vector<1x1xf32>
    %547 = arith.select %546, %536, %532 : vector<1x1xi1>, vector<1x1xf32>
    %548 = arith.select %546, %533, %536 : vector<1x1xi1>, vector<1x1xf32>
    %549 = arith.addf %547, %548 : vector<1x1xf32>
    %cst_276 = arith.constant 5.000000e-01 : f32
    %550 = vector.broadcast %cst_276 : f32 to vector<1x1xf32>
    %551 = arith.mulf %549, %550 : vector<1x1xf32>
    %552 = vector.broadcast %551 : vector<1x1xf32> to vector<2x128xf32>
    %553 = arith.cmpf oge, %357, %552 : vector<2x128xf32>
    %cst_277 = arith.constant 1.000000e+00 : f32
    %cst_278 = arith.constant 0.000000e+00 : f32
    %554 = vector.broadcast %cst_277 : f32 to vector<2x128xf32>
    %555 = vector.broadcast %cst_278 : f32 to vector<2x128xf32>
    %556 = arith.select %553, %554, %555 : vector<2x128xi1>, vector<2x128xf32>
    %cst_279 = arith.constant dense<0.000000e+00> : vector<2xf32>
    %557 = vector.multi_reduction <add>, %556, %cst_279 [1] : vector<2x128xf32> to vector<2xf32>
    %558 = vector.shape_cast %557 : vector<2xf32> to vector<2x1xf32>
    %cst_280 = arith.constant dense<0.000000e+00> : vector<1xf32>
    %559 = vector.multi_reduction <add>, %558, %cst_280 [0] : vector<2x1xf32> to vector<1xf32>
    %560 = vector.shape_cast %559 : vector<1xf32> to vector<1x1xf32>
    %561 = arith.cmpf oge, %560, %361 : vector<1x1xf32>
    %562 = arith.select %561, %551, %547 : vector<1x1xi1>, vector<1x1xf32>
    %563 = arith.select %561, %548, %551 : vector<1x1xi1>, vector<1x1xf32>
    %564 = arith.addf %562, %563 : vector<1x1xf32>
    %cst_281 = arith.constant 5.000000e-01 : f32
    %565 = vector.broadcast %cst_281 : f32 to vector<1x1xf32>
    %566 = arith.mulf %564, %565 : vector<1x1xf32>
    %567 = vector.broadcast %566 : vector<1x1xf32> to vector<2x128xf32>
    %568 = arith.cmpf oge, %357, %567 : vector<2x128xf32>
    %cst_282 = arith.constant 1.000000e+00 : f32
    %cst_283 = arith.constant 0.000000e+00 : f32
    %569 = vector.broadcast %cst_282 : f32 to vector<2x128xf32>
    %570 = vector.broadcast %cst_283 : f32 to vector<2x128xf32>
    %571 = arith.select %568, %569, %570 : vector<2x128xi1>, vector<2x128xf32>
    %cst_284 = arith.constant dense<0.000000e+00> : vector<2xf32>
    %572 = vector.multi_reduction <add>, %571, %cst_284 [1] : vector<2x128xf32> to vector<2xf32>
    %573 = vector.shape_cast %572 : vector<2xf32> to vector<2x1xf32>
    %cst_285 = arith.constant dense<0.000000e+00> : vector<1xf32>
    %574 = vector.multi_reduction <add>, %573, %cst_285 [0] : vector<2x1xf32> to vector<1xf32>
    %575 = vector.shape_cast %574 : vector<1xf32> to vector<1x1xf32>
    %576 = arith.cmpf oge, %575, %361 : vector<1x1xf32>
    %577 = arith.select %576, %566, %562 : vector<1x1xi1>, vector<1x1xf32>
    %578 = arith.select %576, %563, %566 : vector<1x1xi1>, vector<1x1xf32>
    %579 = arith.addf %577, %578 : vector<1x1xf32>
    %cst_286 = arith.constant 5.000000e-01 : f32
    %580 = vector.broadcast %cst_286 : f32 to vector<1x1xf32>
    %581 = arith.mulf %579, %580 : vector<1x1xf32>
    %582 = vector.broadcast %581 : vector<1x1xf32> to vector<2x128xf32>
    %583 = arith.cmpf oge, %357, %582 : vector<2x128xf32>
    %cst_287 = arith.constant 1.000000e+00 : f32
    %cst_288 = arith.constant 0.000000e+00 : f32
    %584 = vector.broadcast %cst_287 : f32 to vector<2x128xf32>
    %585 = vector.broadcast %cst_288 : f32 to vector<2x128xf32>
    %586 = arith.select %583, %584, %585 : vector<2x128xi1>, vector<2x128xf32>
    %cst_289 = arith.constant dense<0.000000e+00> : vector<2xf32>
    %587 = vector.multi_reduction <add>, %586, %cst_289 [1] : vector<2x128xf32> to vector<2xf32>
    %588 = vector.shape_cast %587 : vector<2xf32> to vector<2x1xf32>
    %cst_290 = arith.constant dense<0.000000e+00> : vector<1xf32>
    %589 = vector.multi_reduction <add>, %588, %cst_290 [0] : vector<2x1xf32> to vector<1xf32>
    %590 = vector.shape_cast %589 : vector<1xf32> to vector<1x1xf32>
    %591 = arith.cmpf oge, %590, %361 : vector<1x1xf32>
    %592 = arith.select %591, %581, %577 : vector<1x1xi1>, vector<1x1xf32>
    %593 = arith.select %591, %578, %581 : vector<1x1xi1>, vector<1x1xf32>
    %594 = arith.addf %592, %593 : vector<1x1xf32>
    %cst_291 = arith.constant 5.000000e-01 : f32
    %595 = vector.broadcast %cst_291 : f32 to vector<1x1xf32>
    %596 = arith.mulf %594, %595 : vector<1x1xf32>
    %597 = vector.broadcast %596 : vector<1x1xf32> to vector<2x128xf32>
    %598 = arith.cmpf oge, %357, %597 : vector<2x128xf32>
    %cst_292 = arith.constant 1.000000e+00 : f32
    %cst_293 = arith.constant 0.000000e+00 : f32
    %599 = vector.broadcast %cst_292 : f32 to vector<2x128xf32>
    %600 = vector.broadcast %cst_293 : f32 to vector<2x128xf32>
    %601 = arith.select %598, %599, %600 : vector<2x128xi1>, vector<2x128xf32>
    %cst_294 = arith.constant dense<0.000000e+00> : vector<2xf32>
    %602 = vector.multi_reduction <add>, %601, %cst_294 [1] : vector<2x128xf32> to vector<2xf32>
    %603 = vector.shape_cast %602 : vector<2xf32> to vector<2x1xf32>
    %cst_295 = arith.constant dense<0.000000e+00> : vector<1xf32>
    %604 = vector.multi_reduction <add>, %603, %cst_295 [0] : vector<2x1xf32> to vector<1xf32>
    %605 = vector.shape_cast %604 : vector<1xf32> to vector<1x1xf32>
    %606 = arith.cmpf oge, %605, %361 : vector<1x1xf32>
    %607 = arith.select %606, %596, %592 : vector<1x1xi1>, vector<1x1xf32>
    %608 = arith.select %606, %593, %596 : vector<1x1xi1>, vector<1x1xf32>
    %609 = arith.addf %607, %608 : vector<1x1xf32>
    %cst_296 = arith.constant 5.000000e-01 : f32
    %610 = vector.broadcast %cst_296 : f32 to vector<1x1xf32>
    %611 = arith.mulf %609, %610 : vector<1x1xf32>
    %612 = vector.broadcast %611 : vector<1x1xf32> to vector<2x128xf32>
    %613 = arith.cmpf oge, %357, %612 : vector<2x128xf32>
    %cst_297 = arith.constant 1.000000e+00 : f32
    %cst_298 = arith.constant 0.000000e+00 : f32
    %614 = vector.broadcast %cst_297 : f32 to vector<2x128xf32>
    %615 = vector.broadcast %cst_298 : f32 to vector<2x128xf32>
    %616 = arith.select %613, %614, %615 : vector<2x128xi1>, vector<2x128xf32>
    %cst_299 = arith.constant dense<0.000000e+00> : vector<2xf32>
    %617 = vector.multi_reduction <add>, %616, %cst_299 [1] : vector<2x128xf32> to vector<2xf32>
    %618 = vector.shape_cast %617 : vector<2xf32> to vector<2x1xf32>
    %cst_300 = arith.constant dense<0.000000e+00> : vector<1xf32>
    %619 = vector.multi_reduction <add>, %618, %cst_300 [0] : vector<2x1xf32> to vector<1xf32>
    %620 = vector.shape_cast %619 : vector<1xf32> to vector<1x1xf32>
    %621 = arith.cmpf oge, %620, %361 : vector<1x1xf32>
    %622 = arith.select %621, %611, %607 : vector<1x1xi1>, vector<1x1xf32>
    %623 = arith.select %621, %608, %611 : vector<1x1xi1>, vector<1x1xf32>
    %624 = arith.addf %622, %623 : vector<1x1xf32>
    %cst_301 = arith.constant 5.000000e-01 : f32
    %625 = vector.broadcast %cst_301 : f32 to vector<1x1xf32>
    %626 = arith.mulf %624, %625 : vector<1x1xf32>
    %627 = vector.broadcast %626 : vector<1x1xf32> to vector<2x128xf32>
    %628 = arith.cmpf oge, %357, %627 : vector<2x128xf32>
    %cst_302 = arith.constant 1.000000e+00 : f32
    %cst_303 = arith.constant 0.000000e+00 : f32
    %629 = vector.broadcast %cst_302 : f32 to vector<2x128xf32>
    %630 = vector.broadcast %cst_303 : f32 to vector<2x128xf32>
    %631 = arith.select %628, %629, %630 : vector<2x128xi1>, vector<2x128xf32>
    %cst_304 = arith.constant dense<0.000000e+00> : vector<2xf32>
    %632 = vector.multi_reduction <add>, %631, %cst_304 [1] : vector<2x128xf32> to vector<2xf32>
    %633 = vector.shape_cast %632 : vector<2xf32> to vector<2x1xf32>
    %cst_305 = arith.constant dense<0.000000e+00> : vector<1xf32>
    %634 = vector.multi_reduction <add>, %633, %cst_305 [0] : vector<2x1xf32> to vector<1xf32>
    %635 = vector.shape_cast %634 : vector<1xf32> to vector<1x1xf32>
    %636 = arith.cmpf oge, %635, %361 : vector<1x1xf32>
    %637 = arith.select %636, %626, %622 : vector<1x1xi1>, vector<1x1xf32>
    %638 = arith.select %636, %623, %626 : vector<1x1xi1>, vector<1x1xf32>
    %639 = vector.broadcast %638 : vector<1x1xf32> to vector<2x128xf32>
    %640 = arith.cmpf oge, %357, %639 : vector<2x128xf32>
    %cst_306 = arith.constant 0.000000e+00 : f32
    %641 = vector.broadcast %cst_306 : f32 to vector<2x128xf32>
    %642 = arith.select %640, %357, %641 : vector<2x128xi1>, vector<2x128xf32>
    %cst_307 = arith.constant dense<0.000000e+00> : vector<2xf32>
    %643 = vector.multi_reduction <add>, %642, %cst_307 [1] : vector<2x128xf32> to vector<2xf32>
    %644 = vector.shape_cast %643 : vector<2xf32> to vector<2x1xf32>
    %cst_308 = arith.constant dense<0.000000e+00> : vector<1xf32>
    %645 = vector.multi_reduction <add>, %644, %cst_308 [0] : vector<2x1xf32> to vector<1xf32>
    %646 = vector.shape_cast %645 : vector<1xf32> to vector<1x1xf32>
    %cst_309 = arith.constant 1.000000e+00 : f32
    %cst_310 = arith.constant 0.000000e+00 : f32
    %647 = vector.broadcast %cst_309 : f32 to vector<2x128xf32>
    %648 = vector.broadcast %cst_310 : f32 to vector<2x128xf32>
    %649 = arith.select %640, %647, %648 : vector<2x128xi1>, vector<2x128xf32>
    %cst_311 = arith.constant dense<0.000000e+00> : vector<2xf32>
    %650 = vector.multi_reduction <add>, %649, %cst_311 [1] : vector<2x128xf32> to vector<2xf32>
    %651 = vector.shape_cast %650 : vector<2xf32> to vector<2x1xf32>
    %cst_312 = arith.constant dense<0.000000e+00> : vector<1xf32>
    %652 = vector.multi_reduction <add>, %651, %cst_312 [0] : vector<2x1xf32> to vector<1xf32>
    %653 = vector.shape_cast %652 : vector<1xf32> to vector<1x1xf32>
    %654 = arith.subf %361, %653 : vector<1x1xf32>
    %cst_313 = arith.constant 0.000000e+00 : f32
    %655 = vector.broadcast %cst_313 : f32 to vector<1x1xf32>
    %656 = arith.maximumf %654, %655 : vector<1x1xf32>
    %657 = arith.mulf %656, %637 : vector<1x1xf32>
    %658 = arith.addf %646, %657 : vector<1x1xf32>
    %659 = arith.addf %353, %658 : vector<1x1xf32>
    %cst_314 = arith.constant 1.000000e+00 : f32
    %660 = vector.broadcast %cst_314 : f32 to vector<1x1xf32>
    %661 = arith.mulf %660, %117 : vector<1x1xf32>
    %662 = arith.addf %659, %661 : vector<1x1xf32>
    %663 = arith.divf %662, %24 : vector<1x1xf32>
    %664 = tpu.iota {dimensions = array<i32: 0>} : vector<8x128xi32>
    %c0_i32_315 = arith.constant 0 : i32
    %665 = vector.broadcast %c0_i32_315 : i32 to vector<8x128xi32>
    %666 = arith.cmpi eq, %664, %665 : vector<8x128xi32>
    %c1_i32_316 = arith.constant 1 : i32
    %667 = vector.broadcast %c1_i32_316 : i32 to vector<8x128xi32>
    %668 = arith.cmpi eq, %664, %667 : vector<8x128xi32>
    %cst_317 = arith.constant 0.000000e+00 : f32
    %669 = vector.shape_cast %24 : vector<1x1xf32> to vector<1x1xf32>
    %670 = vector.broadcast %669 : vector<1x1xf32> to vector<8x128xf32>
    %671 = vector.broadcast %cst_317 : f32 to vector<8x128xf32>
    %672 = arith.select %668, %670, %671 : vector<8x128xi1>, vector<8x128xf32>
    %673 = vector.shape_cast %663 : vector<1x1xf32> to vector<1x1xf32>
    %674 = vector.broadcast %673 : vector<1x1xf32> to vector<8x128xf32>
    %675 = arith.select %666, %674, %672 : vector<8x128xi1>, vector<8x128xf32>
    %c0_318 = arith.constant 0 : index
    %c0_319 = arith.constant 0 : index
    %c0_320 = arith.constant 0 : index
    %676 = vector.load %arg5[%c0_318, %c0_319, %c0_320] : memref<1x8x128xf32, #tpu.memory_space<vmem>>, vector<1x8x128xf32>
    %677 = vector.shape_cast %676 : vector<1x8x128xf32> to vector<8x128xf32>
    %678 = vector.shape_cast %675 : vector<8x128xf32> to vector<1x8x128xf32>
    tpu.vector_store %arg5[%c0_318, %c0_319, %c0_320], %678 {strides = array<i32>} : memref<1x8x128xf32, #tpu.memory_space<vmem>>, vector<1x8x128xf32>,
    return
  }
  func.func @transform_0(%arg0: i32) -> (i32, i32) {
    %c0_i32 = arith.constant 0 : i32
    %c0_i32_0 = arith.constant 0 : i32
    %c0_i32_1 = arith.constant 0 : i32
    return %c0_i32, %c0_i32_0 : i32, i32
  }
  func.func @transform_1(%arg0: i32) -> (i32, i32, i32, i32) {
    %c0_i32 = arith.constant 0 : i32
    %c0_i32_0 = arith.constant 0 : i32
    %c0_i32_1 = arith.constant 0 : i32
    %c0_i32_2 = arith.constant 0 : i32
    return %arg0, %c0_i32, %c0_i32_0, %c0_i32_1 : i32, i32, i32, i32
  }
  func.func @transform_2(%arg0: i32) -> (i32, i32, i32, i32) {
    %c0_i32 = arith.constant 0 : i32
    %c0_i32_0 = arith.constant 0 : i32
    %c0_i32_1 = arith.constant 0 : i32
    %c0_i32_2 = arith.constant 0 : i32
    return %arg0, %c0_i32, %c0_i32_0, %c0_i32_1 : i32, i32, i32, i32
  }
  func.func @transform_3(%arg0: i32) -> (i32, i32, i32) {
    %c0_i32 = arith.constant 0 : i32
    %c0_i32_0 = arith.constant 0 : i32
    %c0_i32_1 = arith.constant 0 : i32
    %c0_i32_2 = arith.constant 0 : i32
    return %c0_i32, %c0_i32_0, %c0_i32_1 : i32, i32, i32
  }
  func.func @transform_4(%arg0: i32) -> (i32, i32, i32) {
    %c0_i32 = arith.constant 0 : i32
    %c0_i32_0 = arith.constant 0 : i32
    %c0_i32_1 = arith.constant 0 : i32
    return %arg0, %c0_i32, %c0_i32_0 : i32, i32, i32
  }
}

</mosaic_0001>

<llo_original>
// kernel: tpu_custom_call.1
$region0: #{tpu_custom_call.1}
  #allocation0 [shape = 'u32[]', space=smem, size = 0x4, offset = 0x4, fixed_abs, tag = 'smem constant byte address 0x4 - core index']
  #allocation1 [shape = 'u32[144,128]{1,0:T(1,128)}', space=vmem, size = 0x12000, scoped, tag = 'internal scratch']
  %s0 = inlined_call_operand.hbm [shape: f32[2,64], index: 0, kind: input, shape index: {}]
  %s1 = inlined_call_operand.hbm [shape: f32[2,4,2,128], index: 1, kind: input, shape index: {}]
  %s2 = inlined_call_operand.hbm [shape: f32[2,21,2,128], index: 2, kind: input, shape index: {}]
  %s3 = inlined_call_operand.hbm [shape: f32[9,2,128], index: 3, kind: input, shape index: {}]
  %s4 = inlined_call_operand.hbm [shape: f32[2,8,128], index: 4, kind: output, shape index: {}]
  %s5 = sld [smem:[#allocation0]]
  $region72: #{tpu_custom_call.1} parent=0
    _
  %s7 = ssub.s32 1, %s5
  %s8 = scalar_select 0, %s7, %s5
  $region1: #{tpu_custom_call.1} parent=0
    #allocation2 [shape = 'u8[1024]{0}', space=smem, size = 0x400, scoped, tag = 'input window, operand 0, single buffered']
    #allocation3 [shape = 's32[2]{0}', space=sflag, size = 0x8, scoped, tag = 'scoped memory for tpu_custom_call.1']
    #allocation4 [shape = 's32[2]{0}', space=sflag, size = 0x8, scoped, tag = 'scoped memory for tpu_custom_call.1']
    #allocation5 [shape = 's32[2]{0}', space=sflag, size = 0x8, scoped, tag = 'scoped memory for tpu_custom_call.1']
    #allocation6 [shape = 'u8[8192]{0}', space=vmem, size = 0x2000, scoped, tag = 'input window, operand 1']
    #allocation7 [shape = 'u8[43008]{0}', space=vmem, size = 0xa800, scoped, tag = 'input window, operand 2']
    #allocation8 [shape = 's32[2]{0}', space=sflag, size = 0x8, scoped, tag = 'scoped memory for tpu_custom_call.1']
    #allocation9 [shape = 'u8[9216]{0}', space=vmem, size = 0x2400, scoped, tag = 'input window, operand 3, single buffered']
    #allocation10 [shape = 'u8[8192]{0}', space=vmem, size = 0x2000, scoped, tag = 'output window, operand 0']
    %9 = vsyncpa [#allocation5], 0
    %10 = vsyncpa [#allocation3], 0
    %s11 = scalar_lea.sflag [#allocation3], 1
    %12 = vsyncpa %s11, 0
    %13 = vsyncpa [#allocation8], 0
    %s14 = scalar_lea.sflag [#allocation8], 1
    %15 = vsyncpa %s14, 0
    %16 = vsyncpa [#allocation4], 0
    %s17 = scalar_lea.sflag [#allocation4], 1
    %18 = vsyncpa %s17, 0
    loop: start=0, step=1, limit=4
    $region2: #{tpu_custom_call.1} parent=1 // loop_pre_header
      _
    $region3: #{tpu_custom_call.1} parent=1 // loop_header
      %s20 = sphi 0, %s24
      %p21 = scmp.ge.s32.totalorder %s20, 4
      %s28 = sphi 0, %s28
      %s30 = sphi 0, %s28
      %s31 = sphi 0, %s30
      %s45 = sphi 0, %s31
      %s51 = sphi 0, %s53
      %s54 = sphi 0, %s51
      %s55 = sphi 0, %s54
      %s71 = sphi 0, %s55
      %s77 = sphi 0, %s79
      %s80 = sphi 0, %s77
      %s81 = sphi 0, %s80
      %s97 = sphi 0, %s81
      %s101 = sphi 0, %s101
      %s103 = sphi 0, %s101
      %s104 = sphi 0, %s103
      %s118 = sphi 0, %s104
      %s124 = sphi 0, %s126
      %s127 = sphi 0, %s124
      %s128 = sphi 0, %s127
      %s144 = sphi 0, %s128
    $region4: #{tpu_custom_call.1} parent=1 // loop_header_branch
      %23 = sbr.rel (%p21) target = $region8
    $region5: #{tpu_custom_call.1} parent=1 // loop_body
      %s25 = ssub.s32 %s20, 1
      %s26 = ssub.s32 %s20, 2
      %s27 = sadd.s32 %s20, 1
      %s29 = sadd.s32 %s28, 1
      %p32 = scmp.eq.s32.totalorder %s20, 1
      %p33 = scmp.ne.s32.totalorder %s28, %s30
      %p34 = scmp.eq.s32.totalorder %s20, 0
      %p35 = por %p33, %p34
      %p36 = scmp.ne.s32.totalorder %s28, %s30
      %p37 = scmp.eq.s32.totalorder %s25, 1
      %p38 = por %p36, %p37
      %p39 = scmp.ne.s32.totalorder %s30, %s31
      %p40 = scmp.eq.s32.totalorder %s25, 0
      %p41 = por %p39, %p40
      %p42 = scmp.ne.s32.totalorder %s30, %s31
      %p43 = scmp.eq.s32.totalorder %s26, 1
      %p44 = por %p42, %p43
      %p46 = scmp.ne.s32.totalorder %s31, %s45
      %p47 = scmp.eq.s32.totalorder %s26, 0
      %p48 = por %p46, %p47
      %s49 = ssub.s32 %s20, %s27
      %p50 = scmp.eq.s32.totalorder %s49, 0
      %s52 = sadd.s32 %s51, 1
      %s53 = scalar_select %p50, %s51, %s52
      %p56 = pneg %p50
      %p57 = scmp.eq.s32.totalorder %s20, 1
      %p58 = por %p56, %p57
      %p59 = scmp.ne.s32.totalorder %s51, %s54
      %p60 = scmp.eq.s32.totalorder %s20, 0
      %p61 = por %p59, %p60
      %p62 = scmp.ne.s32.totalorder %s51, %s54
      %p63 = scmp.eq.s32.totalorder %s25, 1
      %p64 = por %p62, %p63
      %p65 = scmp.ne.s32.totalorder %s54, %s55
      %p66 = scmp.eq.s32.totalorder %s25, 0
      %p67 = por %p65, %p66
      %p68 = scmp.ne.s32.totalorder %s54, %s55
      %p69 = scmp.eq.s32.totalorder %s26, 1
      %p70 = por %p68, %p69
      %p72 = scmp.ne.s32.totalorder %s55, %s71
      %p73 = scmp.eq.s32.totalorder %s26, 0
      %p74 = por %p72, %p73
      %s75 = ssub.s32 %s20, %s27
      %p76 = scmp.eq.s32.totalorder %s75, 0
      %s78 = sadd.s32 %s77, 1
      %s79 = scalar_select %p76, %s77, %s78
      %p82 = pneg %p76
      %p83 = scmp.eq.s32.totalorder %s20, 1
      %p84 = por %p82, %p83
      %p85 = scmp.ne.s32.totalorder %s77, %s80
      %p86 = scmp.eq.s32.totalorder %s20, 0
      %p87 = por %p85, %p86
      %p88 = scmp.ne.s32.totalorder %s77, %s80
      %p89 = scmp.eq.s32.totalorder %s25, 1
      %p90 = por %p88, %p89
      %p91 = scmp.ne.s32.totalorder %s80, %s81
      %p92 = scmp.eq.s32.totalorder %s25, 0
      %p93 = por %p91, %p92
      %p94 = scmp.ne.s32.totalorder %s80, %s81
      %p95 = scmp.eq.s32.totalorder %s26, 1
      %p96 = por %p94, %p95
      %p98 = scmp.ne.s32.totalorder %s81, %s97
      %p99 = scmp.eq.s32.totalorder %s26, 0
      %p100 = por %p98, %p99
      %s102 = sadd.s32 %s101, 1
      %p105 = scmp.eq.s32.totalorder %s20, 1
      %p106 = scmp.ne.s32.totalorder %s101, %s103
      %p107 = scmp.eq.s32.totalorder %s20, 0
      %p108 = por %p106, %p107
      %p109 = scmp.ne.s32.totalorder %s101, %s103
      %p110 = scmp.eq.s32.totalorder %s25, 1
      %p111 = por %p109, %p110
      %p112 = scmp.ne.s32.totalorder %s103, %s104
      %p113 = scmp.eq.s32.totalorder %s25, 0
      %p114 = por %p112, %p113
      %p115 = scmp.ne.s32.totalorder %s103, %s104
      %p116 = scmp.eq.s32.totalorder %s26, 1
      %p117 = por %p115, %p116
      %p119 = scmp.ne.s32.totalorder %s104, %s118
      %p120 = scmp.eq.s32.totalorder %s26, 0
      %p121 = por %p119, %p120
      %s122 = ssub.s32 %s20, %s27
      %p123 = scmp.eq.s32.totalorder %s122, 0
      %s125 = sadd.s32 %s124, 1
      %s126 = scalar_select %p123, %s124, %s125
      %p129 = pneg %p123
      %p130 = scmp.eq.s32.totalorder %s20, 1
      %p131 = por %p129, %p130
      %p132 = scmp.ne.s32.totalorder %s124, %s127
      %p133 = scmp.eq.s32.totalorder %s20, 0
      %p134 = por %p132, %p133
      %p135 = scmp.ne.s32.totalorder %s124, %s127
      %p136 = scmp.eq.s32.totalorder %s25, 1
      %p137 = por %p135, %p136
      %p138 = scmp.ne.s32.totalorder %s127, %s128
      %p139 = scmp.eq.s32.totalorder %s25, 0
      %p140 = por %p138, %p139
      %p141 = scmp.ne.s32.totalorder %s127, %s128
      %p142 = scmp.eq.s32.totalorder %s26, 1
      %p143 = por %p141, %p142
      %p145 = scmp.ne.s32.totalorder %s128, %s144
      %p146 = scmp.eq.s32.totalorder %s26, 0
      %p147 = por %p145, %p146
      %p148 = scmp.le.s32.totalorder 1, %s20
      %p149 = scmp.lt.s32.totalorder %s20, 3
      %p150 = pnand %p148, %p149
      %p151 = pneg %p150
      // Predicated region
      $region9: #{tpu_custom_call.1} parent=5 // pred_check
        _
      $region10: #{tpu_custom_call.1} parent=5 // pred_check_branch
        %153 = sbr.rel (%p150) target = $region12
      $region11: #{tpu_custom_call.1} parent=5 // pred_region
        %s154 = ssub.s32 %s20, 1
        // Predicated region
        $region13: #{tpu_custom_call.1} parent=11 // pred_check
          %p155 = pneg %p41
        $region14: #{tpu_custom_call.1} parent=11 // pred_check_branch
          %157 = sbr.rel (%p155) target = $region16
        $region15: #{tpu_custom_call.1} parent=11 // pred_region
          %s159 = ssub.s32 32, 32
          %160 = vsyncadd [#allocation5], %s159
          %163 = dma.hbm_to_smem %s0, 32, [#allocation2], [#allocation5]
        $region16: #{tpu_custom_call.1} parent=11 // pred_fallthru
          _
        // Predicated region
        $region17: #{tpu_custom_call.1} parent=11 // pred_check
          %p164 = pneg %p114
        $region18: #{tpu_custom_call.1} parent=11 // pred_check_branch
          %166 = sbr.rel (%p164) target = $region20
        $region19: #{tpu_custom_call.1} parent=11 // pred_region
          %s168 = ssub.s32 288, 288
          %169 = vsyncadd [#allocation8], %s168
          %s170 = sshll.u32 [#allocation9], 4
          %s171 = int_to_ptr.vmem [resolvable:$true] %s170
          %176 = dma.hbm_to_vmem [thread:$0]  %s3, 288, %s171, [#allocation8], 32, 32, 2
        $region20: #{tpu_custom_call.1} parent=11 // pred_fallthru
          _
      $region12: #{tpu_custom_call.1} parent=5 // pred_fallthru
        _
      %p177 = scmp.lt.s32.totalorder %s20, 2
      // Predicated region
      $region21: #{tpu_custom_call.1} parent=5 // pred_check
        %p178 = pneg %p177
      $region22: #{tpu_custom_call.1} parent=5 // pred_check_branch
        %180 = sbr.rel (%p178) target = $region24
      $region23: #{tpu_custom_call.1} parent=5 // pred_region
        // Predicated region
        $region25: #{tpu_custom_call.1} parent=23 // pred_check
          %p181 = pneg %p61
        $region26: #{tpu_custom_call.1} parent=23 // pred_check_branch
          %183 = sbr.rel (%p181) target = $region28
        $region27: #{tpu_custom_call.1} parent=23 // pred_region
          %s184 = sand.u32 %s51, 1
          %s185 = scalar_lea.sflag [#allocation3], %s184
          %s186 = sand.u32 %s51, 1
          %s187 = smul.addr %s186, 8
          %s188 = scalar_lea.vmem [#allocation6], %s187
          %s190 = ssub.s32 128, 128
          %191 = vsyncadd %s185, %s190
          %s192 = smul.addr %s20, 4
          %s193 = smul.addr %s192, 32
          %s194 = scalar_lea.hbm %s1, %s193
          %s195 = sshll.u32 %s188, 4
          %s196 = int_to_ptr.vmem [resolvable:$true] %s195
          %201 = dma.hbm_to_vmem [thread:$0]  %s194, 128, %s196, %s185, 32, 32, 2
        $region28: #{tpu_custom_call.1} parent=23 // pred_fallthru
          _
        // Predicated region
        $region29: #{tpu_custom_call.1} parent=23 // pred_check
          %p202 = pneg %p87
        $region30: #{tpu_custom_call.1} parent=23 // pred_check_branch
          %204 = sbr.rel (%p202) target = $region32
        $region31: #{tpu_custom_call.1} parent=23 // pred_region
          %s205 = sand.u32 %s20, 1
          %s206 = scalar_lea.sflag [#allocation8], %s205
          %s207 = sand.u32 %s77, 1
          %s208 = smul.addr %s207, 42
          %s209 = scalar_lea.vmem [#allocation7], %s208
          %s211 = ssub.s32 672, 672
          %212 = vsyncadd %s206, %s211
          %s213 = smul.addr %s20, 21
          %s214 = smul.addr %s213, 32
          %s215 = scalar_lea.hbm %s2, %s214
          %s216 = sshll.u32 %s209, 4
          %s217 = int_to_ptr.vmem [resolvable:$true] %s216
          %222 = dma.hbm_to_vmem [thread:$0]  %s215, 672, %s217, %s206, 32, 32, 2
        $region32: #{tpu_custom_call.1} parent=23 // pred_fallthru
          _
      $region24: #{tpu_custom_call.1} parent=5 // pred_fallthru
        _
      %p223 = scmp.le.s32.totalorder 1, %s20
      %p224 = scmp.lt.s32.totalorder %s20, 3
      %p225 = pnand %p223, %p224
      %p226 = pneg %p225
      // Predicated region
      $region33: #{tpu_custom_call.1} parent=5 // pred_check
        _
      $region34: #{tpu_custom_call.1} parent=5 // pred_check_branch
        %228 = sbr.rel (%p225) target = $region36
      $region35: #{tpu_custom_call.1} parent=5 // pred_region
        %s229 = ssub.s32 %s20, 1
        // Predicated region
        $region37: #{tpu_custom_call.1} parent=35 // pred_check
          %p230 = pneg %p41
        $region38: #{tpu_custom_call.1} parent=35 // pred_check_branch
          %232 = sbr.rel (%p230) target = $region40
        $region39: #{tpu_custom_call.1} parent=35 // pred_region
          %233 = dma.done [#allocation5], 32
        $region40: #{tpu_custom_call.1} parent=35 // pred_fallthru
          _
        %s234 = sand.u32 %s54, 1
        %s235 = scalar_lea.sflag [#allocation3], %s234
        %s236 = sand.u32 %s54, 1
        %s237 = smul.addr %s236, 8
        %s238 = scalar_lea.vmem [#allocation6], %s237
        // Predicated region
        $region41: #{tpu_custom_call.1} parent=35 // pred_check
          %p239 = pneg %p67
        $region42: #{tpu_custom_call.1} parent=35 // pred_check_branch
          %241 = sbr.rel (%p239) target = $region44
        $region43: #{tpu_custom_call.1} parent=35 // pred_region
          %242 = dma.done %s235, 128
        $region44: #{tpu_custom_call.1} parent=35 // pred_fallthru
          _
        %s243 = sand.u32 %s25, 1
        %s244 = scalar_lea.sflag [#allocation8], %s243
        %s245 = sand.u32 %s80, 1
        %s246 = smul.addr %s245, 42
        %s247 = scalar_lea.vmem [#allocation7], %s246
        // Predicated region
        $region45: #{tpu_custom_call.1} parent=35 // pred_check
          %p248 = pneg %p93
        $region46: #{tpu_custom_call.1} parent=35 // pred_check_branch
          %250 = sbr.rel (%p248) target = $region48
        $region47: #{tpu_custom_call.1} parent=35 // pred_region
          %251 = dma.done %s244, 672
        $region48: #{tpu_custom_call.1} parent=35 // pred_fallthru
          _
        // Predicated region
        $region49: #{tpu_custom_call.1} parent=35 // pred_check
          %p252 = pneg %p114
        $region50: #{tpu_custom_call.1} parent=35 // pred_check_branch
          %254 = sbr.rel (%p252) target = $region52
        $region51: #{tpu_custom_call.1} parent=35 // pred_region
          %255 = dma.done [#allocation8], 288
        $region52: #{tpu_custom_call.1} parent=35 // pred_fallthru
          _
        %256 = sfence
        %p257 = pneg %p41
        %p258 = pneg %p38
        %s259 = sand.u32 %s54, 1
        %s260 = scalar_lea.sflag [#allocation3], %s259
        %s261 = sand.u32 %s54, 1
        %s262 = smul.addr %s261, 8
        %s263 = scalar_lea.vmem [#allocation6], %s262
        %p264 = pneg %p67
        %p265 = pneg %p64
        %s266 = sand.u32 %s25, 1
        %s267 = scalar_lea.sflag [#allocation8], %s266
        %s268 = sand.u32 %s80, 1
        %s269 = smul.addr %s268, 42
        %s270 = scalar_lea.vmem [#allocation7], %s269
        %p271 = pneg %p93
        %p272 = pneg %p90
        %p273 = pneg %p114
        %p274 = pneg %p111
        %p275 = pneg %p140
        %p276 = pneg %p137
        %s277 = sand.u32 %s127, 1
        %s278 = scalar_lea.sflag [#allocation4], %s277
        %s279 = sand.u32 %s127, 1
        %s280 = smul.addr %s279, 8
        %s281 = scalar_lea.vmem [#allocation10], %s280
        %v282 = vlaneseq
        %v283 = vshrl.u32 %v282, 7
        %v284 = vmul.u32 %v283, 128
        %v285 = vlaneseq
        %v286 = vand.u32 %v285, 127
        %v287 = vadd.s32 %v284, %v286
        %vm288 = vcmp.lt.s32.totalorder %v287, 256
        loop: start=0, step=1, limit=8
        $region53: #{tpu_custom_call.1} parent=35 // loop_pre_header
          _
        $region54: #{tpu_custom_call.1} parent=35 // loop_header
          %s290 = sphi 0, %s294
          %p291 = scmp.ge.s32.totalorder %s290, 8
          %v295 = vphi 0.0, %v434
          %v296 = vphi 0.0, %v436
          %v297 = vphi 0.0, %v437
          %v298 = vphi 0.0, %v438
          %v299 = vphi 0.0, %v439
          %v300 = vphi 0.0, %v440
        $region55: #{tpu_custom_call.1} parent=35 // loop_header_branch
          %293 = sbr.rel (%p291) target = $region59
        $region56: #{tpu_custom_call.1} parent=35 // loop_body
          %s301 = smul.u32 %s290, 8
          %s302 = sshra.s32 %s301, 7
          %s303 = sand.u32 %s301, 127
          %s304 = sadd.s32 %s302, %s25
          %s305 = smul.u32 %s304, 128
          %s306 = sshra.s32 %s301, 7
          %s307 = sand.u32 %s301, 127
          %s308 = sadd.s32 %s305, %s307
          %s309 = sld [smem:[#allocation2 + %s308]]
          %s310 = sadd.s32 %s301, 1
          %s311 = sshra.s32 %s310, 7
          %s312 = sand.u32 %s310, 127
          %s313 = sadd.s32 %s311, %s25
          %s314 = smul.u32 %s313, 128
          %s315 = sshra.s32 %s310, 7
          %s316 = sand.u32 %s310, 127
          %s317 = sadd.s32 %s314, %s316
          %s318 = sld [smem:[#allocation2 + %s317]]
          %s319 = sadd.s32 %s301, 2
          %s320 = sshra.s32 %s319, 7
          %s321 = sand.u32 %s319, 127
          %s322 = sadd.s32 %s320, %s25
          %s323 = smul.u32 %s322, 128
          %s324 = sshra.s32 %s319, 7
          %s325 = sand.u32 %s319, 127
          %s326 = sadd.s32 %s323, %s325
          %s327 = sld [smem:[#allocation2 + %s326]]
          %s328 = sadd.s32 %s301, 3
          %s329 = sshra.s32 %s328, 7
          %s330 = sand.u32 %s328, 127
          %s331 = sadd.s32 %s329, %s25
          %s332 = smul.u32 %s331, 128
          %s333 = sshra.s32 %s328, 7
          %s334 = sand.u32 %s328, 127
          %s335 = sadd.s32 %s332, %s334
          %s336 = sld [smem:[#allocation2 + %s335]]
          %s337 = sadd.s32 %s301, 4
          %s338 = sshra.s32 %s337, 7
          %s339 = sand.u32 %s337, 127
          %s340 = sadd.s32 %s338, %s25
          %s341 = smul.u32 %s340, 128
          %s342 = sshra.s32 %s337, 7
          %s343 = sand.u32 %s337, 127
          %s344 = sadd.s32 %s341, %s343
          %s345 = sld [smem:[#allocation2 + %s344]]
          %s346 = sadd.s32 %s301, 5
          %s347 = sshra.s32 %s346, 7
          %s348 = sand.u32 %s346, 127
          %s349 = sadd.s32 %s347, %s25
          %s350 = smul.u32 %s349, 128
          %s351 = sshra.s32 %s346, 7
          %s352 = sand.u32 %s346, 127
          %s353 = sadd.s32 %s350, %s352
          %s354 = sld [smem:[#allocation2 + %s353]]
          %p355 = scmp.gt.f32.partialorder %s354, 0.5
          %v356 = vld [vmem:[#allocation9] sm:$0x3]
          %s357 = scalar_lea.vmem [#allocation9], 2
          %v358 = vld [vmem:[%s357] sm:$0x3]
          %s359 = scalar_lea.vmem [#allocation9], 4
          %v360 = vld [vmem:[%s359] sm:$0x3]
          %s361 = scalar_lea.vmem [#allocation9], 6
          %v362 = vld [vmem:[%s361] sm:$0x3]
          %s363 = scalar_lea.vmem [#allocation9], 8
          %v364 = vld [vmem:[%s363] sm:$0x3]
          %v365 = vstv %s318
          %v366 = vmax.f32 %v356, %v365
          %v367 = vstv %s327
          %v368 = vmax.f32 %v358, %v367
          %v369 = vstv %s336
          %v370 = vmin.f32 %v360, %v369
          %v371 = vstv %s345
          %v372 = vmin.f32 %v362, %v371
          %v373 = vsub.f32 %v370, %v366
          %v374 = vmax.f32 %v373, 0.0
          %v375 = vsub.f32 %v372, %v368
          %v376 = vmax.f32 %v375, 0.0
          %v377 = vmul.f32 %v374, %v376
          %s378 = ssub.f32 %s336, %s318
          %s379 = ssub.f32 %s345, %s327
          %s380 = smul.f32 %s378, %s379
          %v381 = vstv %s380
          %v382 = vadd.f32 %v381, %v364
          %v383 = vsub.f32 %v382, %v377
          %v384 = vrcp.pop %v383
          %v385 = vmul.f32 %v377, %v384
          %v386 = vsel %vm288, %v385, -1.0
          %vm387 = vcmp.gt.f32.partialorder %v386, %v295
          %s388 = scalar_select %p355, 1, 0
          %v389 = vstv %s388
          %vm390 = vcmp.eq.s32.totalorder %v389, 1
          %vm391 = vmand %vm387, %vm390
          %vm392 = vcmask 1041408
          %v393 = vsel %vm392, %v386, -inf
          %394 = vmax.xlane.f32.xlu0 %v393
          %v395 = vpop.xlane.xlu0 %394
          %v396 = vsel %vm392, %v395, -inf
          %v397 = vrot.slane %v396, 4
          %v398 = vmax.f32 %v396, %v397
          %v399 = vrot.slane %v398, 2
          %v400 = vmax.f32 %v398, %v399
          %v401 = vrot.slane %v400, 1
          %v402 = vmax.f32 %v400, %v401
          %vm403 = vcmp.eq.f32.partialorder %v386, %v402
          %v404 = vsel %vm403, %v287, 256
          %v405 = vsel %vm392, %v404, 2147483647
          %v406 = vand.u32 %v405, 65535
          %v407 = vshra.s32 %v405, 16
          %v408 = vcvt.s32.f32 %v406
          %v409 = vcvt.s32.f32 %v407
          %410 = vmin.xlane.f32.xlu0 %v409
          %v411 = vpop.xlane.xlu0 %410
          %vm412 = vcmp.eq.f32.partialorder %v409, %v411
          %v413 = vsel %vm412, %v408, inf
          %414 = vmin.xlane.f32.xlu0 %v413
          %v415 = vpop.xlane.xlu0 %414
          %v416 = vcvt.f32.s32 %v415
          %v417 = vcvt.f32.s32 %v411
          %v418 = vshll.u32 %v417, 16
          %v419 = vadd.s32 %v418, %v416
          %v420 = vsel %vm392, %v419, 2147483647
          %v421 = vrot.slane %v420, 4
          %vm422 = vcmp.lt.s32.totalorder %v420, %v421
          %v423 = vsel %vm422, %v420, %v421
          %v424 = vrot.slane %v423, 2
          %vm425 = vcmp.lt.s32.totalorder %v423, %v424
          %v426 = vsel %vm425, %v423, %v424
          %v427 = vrot.slane %v426, 1
          %vm428 = vcmp.lt.s32.totalorder %v426, %v427
          %v429 = vsel %vm428, %v426, %v427
          %vm430 = vcmp.eq.s32.totalorder %v287, %v429
          %vm431 = vmand %vm430, %vm390
          %vm432 = vmor %vm391, %vm431
          %v433 = vsel %vm391, %v386, %v295
          %v434 = vsel %vm431, 2.0, %v433
          %v435 = vstv %s309
          %v436 = vsel %vm432, %v435, %v296
          %v437 = vsel %vm432, %v365, %v297
          %v438 = vsel %vm432, %v367, %v298
          %v439 = vsel %vm432, %v369, %v299
          %v440 = vsel %vm432, %v371, %v300
        $region57: #{tpu_custom_call.1} parent=35 // loop_footer
          %s294 = sadd.s32 1, %s290
        $region58: #{tpu_custom_call.1} parent=35 // loop_footer_branch
          %289 = sbr.rel target = $region54
        $region59: #{tpu_custom_call.1} parent=35 // loop_exit
          _
        %vm441 = vcmp.lt.f32.partialorder %v295, 0.5
        %v442 = vsel %vm441, 0.0, %v296
        %v443 = vcvt.f32.s32.to.zero.pseudo %v442
        %vm444 = vcmp.gt.f32.partialorder %v442, 0.5
        %vm445 = vmand %vm444, %vm288
        %v446 = vsel %vm445, 1.0, 0.0
        %vm447 = vcmask 1041408
        %v448 = vsel %vm447, %v446, 0.0
        %449 = vadd.xlane.f32.xlu0 %v448
        %v450 = vpop.xlane.xlu0 %449
        %v451 = vsel %vm447, %v450, 0.0
        %v452 = vrot.slane %v451, 4
        %v453 = vadd.f32 %v451, %v452
        %v454 = vrot.slane %v453, 2
        %v455 = vadd.f32 %v453, %v454
        %v456 = vrot.slane %v455, 1
        %v457 = vadd.f32 %v455, %v456
        %s458 = scalar_lea.vmem [#allocation9], 10
        %v459 = vld [vmem:[%s458] sm:$0x3]
        %s460 = scalar_lea.vmem [#allocation9], 12
        %v461 = vld [vmem:[%s460] sm:$0x3]
        %s462 = scalar_lea.vmem [#allocation9], 14
        %v463 = vld [vmem:[%s462] sm:$0x3]
        %s464 = scalar_lea.vmem [#allocation9], 16
        %v465 = vld [vmem:[%s464] sm:$0x3]
        %v466 = vadd.f32 %v297, %v299
        %v467 = vmul.f32 %v466, 0.5
        %v468 = vadd.f32 %v298, %v300
        %v469 = vmul.f32 %v468, 0.5
        %v470 = vsub.f32 %v299, %v297
        %v471 = vmax.f32 %v470, 1e-08
        %v472 = vsub.f32 %v300, %v298
        %v473 = vmax.f32 %v472, 1e-08
        %v474 = vsub.f32 %v467, %v459
        %v475 = vmul.f32 %v474, 10.0
        %v476 = vmul.f32 %v475, %v463
        %v477 = vsub.f32 %v469, %v461
        %v478 = vmul.f32 %v477, 10.0
        %v479 = vmul.f32 %v478, %v465
        %v480 = vmul.f32 %v471, %v463
        %v481 = vlog2.pop %v480
        %v482 = vmul.f32 %v481, 0.6931472
        %v483 = vmul.f32 %v482, 5.0
        %v484 = vmul.f32 %v473, %v465
        %v485 = vlog2.pop %v484
        %v486 = vmul.f32 %v485, 0.6931472
        %v487 = vmul.f32 %v486, 5.0
        %v488 = vld [vmem:[%s238] sm:$0x3]
        %v489 = vsub.f32 %v488, %v476
        %v490 = vand.u32 2147483647, %v489
        %vm491 = vcmp.lt.f32.partialorder %v490, 1.0
        %v492 = vmul.f32 %v490, 0.5
        %v493 = vmul.f32 %v492, %v490
        %v494 = vsub.f32 %v490, 0.5
        %v495 = vsel %vm491, %v493, %v494
        %s496 = scalar_lea.vmem %s238, 2 [#allocation6]
        %v497 = vld [vmem:[%s496] sm:$0x3]
        %v498 = vsub.f32 %v497, %v479
        %v499 = vand.u32 2147483647, %v498
        %vm500 = vcmp.lt.f32.partialorder %v499, 1.0
        %v501 = vmul.f32 %v499, 0.5
        %v502 = vmul.f32 %v501, %v499
        %v503 = vsub.f32 %v499, 0.5
        %v504 = vsel %vm500, %v502, %v503
        %v505 = vadd.f32 %v495, %v504
        %s506 = scalar_lea.vmem %s238, 4 [#allocation6]
        %v507 = vld [vmem:[%s506] sm:$0x3]
        %v508 = vsub.f32 %v507, %v483
        %v509 = vand.u32 2147483647, %v508
        %vm510 = vcmp.lt.f32.partialorder %v509, 1.0
        %v511 = vmul.f32 %v509, 0.5
        %v512 = vmul.f32 %v511, %v509
        %v513 = vsub.f32 %v509, 0.5
        %v514 = vsel %vm510, %v512, %v513
        %v515 = vadd.f32 %v505, %v514
        %s516 = scalar_lea.vmem %s238, 6 [#allocation6]
        %v517 = vld [vmem:[%s516] sm:$0x3]
        %v518 = vsub.f32 %v517, %v487
        %v519 = vand.u32 2147483647, %v518
        %vm520 = vcmp.lt.f32.partialorder %v519, 1.0
        %v521 = vmul.f32 %v519, 0.5
        %v522 = vmul.f32 %v521, %v519
        %v523 = vsub.f32 %v519, 0.5
        %v524 = vsel %vm520, %v522, %v523
        %v525 = vadd.f32 %v515, %v524
        %v526 = vsel %vm445, %v525, 0.0
        %v527 = vsel %vm447, %v526, 0.0
        %528 = vadd.xlane.f32.xlu0 %v527
        %v529 = vpop.xlane.xlu0 %528
        %v530 = vsel %vm447, %v529, 0.0
        %v531 = vrot.slane %v530, 4
        %v532 = vadd.f32 %v530, %v531
        %v533 = vrot.slane %v532, 2
        %v534 = vadd.f32 %v532, %v533
        %v535 = vrot.slane %v534, 1
        %v536 = vadd.f32 %v534, %v535
        %v537 = vld [vmem:[%s247] sm:$0x3]
        %vm538 = vcmp.eq.s32.totalorder %v443, 0
        %v539 = vsel %vm538, %v537, 0.0
        %s540 = scalar_lea.vmem %s247, 2 [#allocation7]
        %v541 = vld [vmem:[%s540] sm:$0x3]
        %v542 = vmax.f32 %v537, %v541
        %vm543 = vcmp.eq.s32.totalorder %v443, 1
        %v544 = vsel %vm543, %v541, %v539
        %s545 = scalar_lea.vmem %s247, 4 [#allocation7]
        %v546 = vld [vmem:[%s545] sm:$0x3]
        %v547 = vmax.f32 %v542, %v546
        %vm548 = vcmp.eq.s32.totalorder %v443, 2
        %v549 = vsel %vm548, %v546, %v544
        %s550 = scalar_lea.vmem %s247, 6 [#allocation7]
        %v551 = vld [vmem:[%s550] sm:$0x3]
        %v552 = vmax.f32 %v547, %v551
        %vm553 = vcmp.eq.s32.totalorder %v443, 3
        %v554 = vsel %vm553, %v551, %v549
        %s555 = scalar_lea.vmem %s247, 8 [#allocation7]
        %v556 = vld [vmem:[%s555] sm:$0x3]
        %v557 = vmax.f32 %v552, %v556
        %vm558 = vcmp.eq.s32.totalorder %v443, 4
        %v559 = vsel %vm558, %v556, %v554
        %s560 = scalar_lea.vmem %s247, 10 [#allocation7]
        %v561 = vld [vmem:[%s560] sm:$0x3]
        %v562 = vmax.f32 %v557, %v561
        %vm563 = vcmp.eq.s32.totalorder %v443, 5
        %v564 = vsel %vm563, %v561, %v559
        %s565 = scalar_lea.vmem %s247, 12 [#allocation7]
        %v566 = vld [vmem:[%s565] sm:$0x3]
        %v567 = vmax.f32 %v562, %v566
        %vm568 = vcmp.eq.s32.totalorder %v443, 6
        %v569 = vsel %vm568, %v566, %v564
        %s570 = scalar_lea.vmem %s247, 14 [#allocation7]
        %v571 = vld [vmem:[%s570] sm:$0x3]
        %v572 = vmax.f32 %v567, %v571
        %vm573 = vcmp.eq.s32.totalorder %v443, 7
        %v574 = vsel %vm573, %v571, %v569
        %s575 = scalar_lea.vmem %s247, 16 [#allocation7]
        %v576 = vld [vmem:[%s575] sm:$0x3]
        %v577 = vmax.f32 %v572, %v576
        %vm578 = vcmp.eq.s32.totalorder %v443, 8
        %v579 = vsel %vm578, %v576, %v574
        %s580 = scalar_lea.vmem %s247, 18 [#allocation7]
        %v581 = vld [vmem:[%s580] sm:$0x3]
        %v582 = vmax.f32 %v577, %v581
        %vm583 = vcmp.eq.s32.totalorder %v443, 9
        %v584 = vsel %vm583, %v581, %v579
        %s585 = scalar_lea.vmem %s247, 20 [#allocation7]
        %v586 = vld [vmem:[%s585] sm:$0x3]
        %v587 = vmax.f32 %v582, %v586
        %vm588 = vcmp.eq.s32.totalorder %v443, 10
        %v589 = vsel %vm588, %v586, %v584
        %s590 = scalar_lea.vmem %s247, 22 [#allocation7]
        %v591 = vld [vmem:[%s590] sm:$0x3]
        %v592 = vmax.f32 %v587, %v591
        %vm593 = vcmp.eq.s32.totalorder %v443, 11
        %v594 = vsel %vm593, %v591, %v589
        %s595 = scalar_lea.vmem %s247, 24 [#allocation7]
        %v596 = vld [vmem:[%s595] sm:$0x3]
        %v597 = vmax.f32 %v592, %v596
        %vm598 = vcmp.eq.s32.totalorder %v443, 12
        %v599 = vsel %vm598, %v596, %v594
        %s600 = scalar_lea.vmem %s247, 26 [#allocation7]
        %v601 = vld [vmem:[%s600] sm:$0x3]
        %v602 = vmax.f32 %v597, %v601
        %vm603 = vcmp.eq.s32.totalorder %v443, 13
        %v604 = vsel %vm603, %v601, %v599
        %s605 = scalar_lea.vmem %s247, 28 [#allocation7]
        %v606 = vld [vmem:[%s605] sm:$0x3]
        %v607 = vmax.f32 %v602, %v606
        %vm608 = vcmp.eq.s32.totalorder %v443, 14
        %v609 = vsel %vm608, %v606, %v604
        %s610 = scalar_lea.vmem %s247, 30 [#allocation7]
        %v611 = vld [vmem:[%s610] sm:$0x3]
        %v612 = vmax.f32 %v607, %v611
        %vm613 = vcmp.eq.s32.totalorder %v443, 15
        %v614 = vsel %vm613, %v611, %v609
        %s615 = scalar_lea.vmem %s247, 32 [#allocation7]
        %v616 = vld [vmem:[%s615] sm:$0x3]
        %v617 = vmax.f32 %v612, %v616
        %vm618 = vcmp.eq.s32.totalorder %v443, 16
        %v619 = vsel %vm618, %v616, %v614
        %s620 = scalar_lea.vmem %s247, 34 [#allocation7]
        %v621 = vld [vmem:[%s620] sm:$0x3]
        %v622 = vmax.f32 %v617, %v621
        %vm623 = vcmp.eq.s32.totalorder %v443, 17
        %v624 = vsel %vm623, %v621, %v619
        %s625 = scalar_lea.vmem %s247, 36 [#allocation7]
        %v626 = vld [vmem:[%s625] sm:$0x3]
        %v627 = vmax.f32 %v622, %v626
        %vm628 = vcmp.eq.s32.totalorder %v443, 18
        %v629 = vsel %vm628, %v626, %v624
        %s630 = scalar_lea.vmem %s247, 38 [#allocation7]
        %v631 = vld [vmem:[%s630] sm:$0x3]
        %v632 = vmax.f32 %v627, %v631
        %vm633 = vcmp.eq.s32.totalorder %v443, 19
        %v634 = vsel %vm633, %v631, %v629
        %s635 = scalar_lea.vmem %s247, 40 [#allocation7]
        %v636 = vld [vmem:[%s635] sm:$0x3]
        %v637 = vmax.f32 %v632, %v636
        %vm638 = vcmp.eq.s32.totalorder %v443, 20
        %v639 = vsel %vm638, %v636, %v634
        %v640 = vsub.f32 %v537, %v637
        %v641 = vmul.f32 %v640, 1.442695
        %v642 = vpow.pop %v641
        %v643 = vsub.f32 %v541, %v637
        %v644 = vmul.f32 %v643, 1.442695
        %v645 = vpow.pop %v644
        %v646 = vadd.f32 %v642, %v645
        %v647 = vsub.f32 %v546, %v637
        %v648 = vmul.f32 %v647, 1.442695
        %v649 = vpow.pop %v648
        %v650 = vadd.f32 %v646, %v649
        %v651 = vsub.f32 %v551, %v637
        %v652 = vmul.f32 %v651, 1.442695
        %v653 = vpow.pop %v652
        %v654 = vadd.f32 %v650, %v653
        %v655 = vsub.f32 %v556, %v637
        %v656 = vmul.f32 %v655, 1.442695
        %v657 = vpow.pop %v656
        %v658 = vadd.f32 %v654, %v657
        %v659 = vsub.f32 %v561, %v637
        %v660 = vmul.f32 %v659, 1.442695
        %v661 = vpow.pop %v660
        %v662 = vadd.f32 %v658, %v661
        %v663 = vsub.f32 %v566, %v637
        %v664 = vmul.f32 %v663, 1.442695
        %v665 = vpow.pop %v664
        %v666 = vadd.f32 %v662, %v665
        %v667 = vsub.f32 %v571, %v637
        %v668 = vmul.f32 %v667, 1.442695
        %v669 = vpow.pop %v668
        %v670 = vadd.f32 %v666, %v669
        %v671 = vsub.f32 %v576, %v637
        %v672 = vmul.f32 %v671, 1.442695
        %v673 = vpow.pop %v672
        %v674 = vadd.f32 %v670, %v673
        %v675 = vsub.f32 %v581, %v637
        %v676 = vmul.f32 %v675, 1.442695
        %v677 = vpow.pop %v676
        %v678 = vadd.f32 %v674, %v677
        %v679 = vsub.f32 %v586, %v637
        %v680 = vmul.f32 %v679, 1.442695
        %v681 = vpow.pop %v680
        %v682 = vadd.f32 %v678, %v681
        %v683 = vsub.f32 %v591, %v637
        %v684 = vmul.f32 %v683, 1.442695
        %v685 = vpow.pop %v684
        %v686 = vadd.f32 %v682, %v685
        %v687 = vsub.f32 %v596, %v637
        %v688 = vmul.f32 %v687, 1.442695
        %v689 = vpow.pop %v688
        %v690 = vadd.f32 %v686, %v689
        %v691 = vsub.f32 %v601, %v637
        %v692 = vmul.f32 %v691, 1.442695
        %v693 = vpow.pop %v692
        %v694 = vadd.f32 %v690, %v693
        %v695 = vsub.f32 %v606, %v637
        %v696 = vmul.f32 %v695, 1.442695
        %v697 = vpow.pop %v696
        %v698 = vadd.f32 %v694, %v697
        %v699 = vsub.f32 %v611, %v637
        %v700 = vmul.f32 %v699, 1.442695
        %v701 = vpow.pop %v700
        %v702 = vadd.f32 %v698, %v701
        %v703 = vsub.f32 %v616, %v637
        %v704 = vmul.f32 %v703, 1.442695
        %v705 = vpow.pop %v704
        %v706 = vadd.f32 %v702, %v705
        %v707 = vsub.f32 %v621, %v637
        %v708 = vmul.f32 %v707, 1.442695
        %v709 = vpow.pop %v708
        %v710 = vadd.f32 %v706, %v709
        %v711 = vsub.f32 %v626, %v637
        %v712 = vmul.f32 %v711, 1.442695
        %v713 = vpow.pop %v712
        %v714 = vadd.f32 %v710, %v713
        %v715 = vsub.f32 %v631, %v637
        %v716 = vmul.f32 %v715, 1.442695
        %v717 = vpow.pop %v716
        %v718 = vadd.f32 %v714, %v717
        %v719 = vsub.f32 %v636, %v637
        %v720 = vmul.f32 %v719, 1.442695
        %v721 = vpow.pop %v720
        %v722 = vadd.f32 %v718, %v721
        %v723 = vlog2.pop %v722
        %v724 = vmul.f32 %v723, 0.6931472
        %v725 = vadd.f32 %v724, %v637
        %v726 = vsub.f32 %v725, %v639
        %v727 = vsel %vm445, %v726, 0.0
        %v728 = vsel %vm447, %v727, 0.0
        %729 = vadd.xlane.f32.xlu0 %v728
        %v730 = vpop.xlane.xlu0 %729
        %v731 = vsel %vm447, %v730, 0.0
        %v732 = vrot.slane %v731, 4
        %v733 = vadd.f32 %v731, %v732
        %v734 = vrot.slane %v733, 2
        %v735 = vadd.f32 %v733, %v734
        %v736 = vrot.slane %v735, 1
        %v737 = vadd.f32 %v735, %v736
        %vm738 = vmxor %vm288, 1
        %vm739 = vmor %vm445, %vm738
        %v740 = vsel %vm739, 0.0, %v726
        %v741 = vmul.f32 %v457, 3.0
        %v742 = vmin.f32 %v741, 256.0
        %v743 = vsel %vm447, %v740, -inf
        %744 = vmax.xlane.f32.xlu0 %v743
        %v745 = vpop.xlane.xlu0 %744
        %v746 = vsel %vm447, %v745, -inf
        %v747 = vrot.slane %v746, 4
        %v748 = vmax.f32 %v746, %v747
        %v749 = vrot.slane %v748, 2
        %v750 = vmax.f32 %v748, %v749
        %v751 = vrot.slane %v750, 1
        %v752 = vmax.f32 %v750, %v751
        %v753 = vadd.f32 %v752, 1.0
        %v754 = vadd.f32 %v753, 0.0
        %v755 = vmul.f32 %v754, 0.5
        %vm756 = vcmp.ge.f32.partialorder %v740, %v755
        %v757 = vsel %vm756, 1.0, 0.0
        %v758 = vsel %vm447, %v757, 0.0
        %759 = vadd.xlane.f32.xlu0 %v758
        %v760 = vpop.xlane.xlu0 %759
        %v761 = vsel %vm447, %v760, 0.0
        %v762 = vrot.slane %v761, 4
        %v763 = vadd.f32 %v761, %v762
        %v764 = vrot.slane %v763, 2
        %v765 = vadd.f32 %v763, %v764
        %v766 = vrot.slane %v765, 1
        %v767 = vadd.f32 %v765, %v766
        %vm768 = vcmp.ge.f32.partialorder %v767, %v742
        %v769 = vsel %vm768, %v755, 0.0
        %v770 = vsel %vm768, %v753, %v755
        %v771 = vadd.f32 %v769, %v770
        %v772 = vmul.f32 %v771, 0.5
        %vm773 = vcmp.ge.f32.partialorder %v740, %v772
        %v774 = vsel %vm773, 1.0, 0.0
        %v775 = vsel %vm447, %v774, 0.0
        %776 = vadd.xlane.f32.xlu0 %v775
        %v777 = vpop.xlane.xlu0 %776
        %v778 = vsel %vm447, %v777, 0.0
        %v779 = vrot.slane %v778, 4
        %v780 = vadd.f32 %v778, %v779
        %v781 = vrot.slane %v780, 2
        %v782 = vadd.f32 %v780, %v781
        %v783 = vrot.slane %v782, 1
        %v784 = vadd.f32 %v782, %v783
        %vm785 = vcmp.ge.f32.partialorder %v784, %v742
        %v786 = vsel %vm785, %v772, %v769
        %v787 = vsel %vm785, %v770, %v772
        %v788 = vadd.f32 %v786, %v787
        %v789 = vmul.f32 %v788, 0.5
        %vm790 = vcmp.ge.f32.partialorder %v740, %v789
        %v791 = vsel %vm790, 1.0, 0.0
        %v792 = vsel %vm447, %v791, 0.0
        %793 = vadd.xlane.f32.xlu0 %v792
        %v794 = vpop.xlane.xlu0 %793
        %v795 = vsel %vm447, %v794, 0.0
        %v796 = vrot.slane %v795, 4
        %v797 = vadd.f32 %v795, %v796
        %v798 = vrot.slane %v797, 2
        %v799 = vadd.f32 %v797, %v798
        %v800 = vrot.slane %v799, 1
        %v801 = vadd.f32 %v799, %v800
        %vm802 = vcmp.ge.f32.partialorder %v801, %v742
        %v803 = vsel %vm802, %v789, %v786
        %v804 = vsel %vm802, %v787, %v789
        %v805 = vadd.f32 %v803, %v804
        %v806 = vmul.f32 %v805, 0.5
        %vm807 = vcmp.ge.f32.partialorder %v740, %v806
        %v808 = vsel %vm807, 1.0, 0.0
        %v809 = vsel %vm447, %v808, 0.0
        %810 = vadd.xlane.f32.xlu0 %v809
        %v811 = vpop.xlane.xlu0 %810
        %v812 = vsel %vm447, %v811, 0.0
        %v813 = vrot.slane %v812, 4
        %v814 = vadd.f32 %v812, %v813
        %v815 = vrot.slane %v814, 2
        %v816 = vadd.f32 %v814, %v815
        %v817 = vrot.slane %v816, 1
        %v818 = vadd.f32 %v816, %v817
        %vm819 = vcmp.ge.f32.partialorder %v818, %v742
        %v820 = vsel %vm819, %v806, %v803
        %v821 = vsel %vm819, %v804, %v806
        %v822 = vadd.f32 %v820, %v821
        %v823 = vmul.f32 %v822, 0.5
        %vm824 = vcmp.ge.f32.partialorder %v740, %v823
        %v825 = vsel %vm824, 1.0, 0.0
        %v826 = vsel %vm447, %v825, 0.0
        %827 = vadd.xlane.f32.xlu0 %v826
        %v828 = vpop.xlane.xlu0 %827
        %v829 = vsel %vm447, %v828, 0.0
        %v830 = vrot.slane %v829, 4
        %v831 = vadd.f32 %v829, %v830
        %v832 = vrot.slane %v831, 2
        %v833 = vadd.f32 %v831, %v832
        %v834 = vrot.slane %v833, 1
        %v835 = vadd.f32 %v833, %v834
        %vm836 = vcmp.ge.f32.partialorder %v835, %v742
        %v837 = vsel %vm836, %v823, %v820
        %v838 = vsel %vm836, %v821, %v823
        %v839 = vadd.f32 %v837, %v838
        %v840 = vmul.f32 %v839, 0.5
        %vm841 = vcmp.ge.f32.partialorder %v740, %v840
        %v842 = vsel %vm841, 1.0, 0.0
        %v843 = vsel %vm447, %v842, 0.0
        %844 = vadd.xlane.f32.xlu0 %v843
        %v845 = vpop.xlane.xlu0 %844
        %v846 = vsel %vm447, %v845, 0.0
        %v847 = vrot.slane %v846, 4
        %v848 = vadd.f32 %v846, %v847
        %v849 = vrot.slane %v848, 2
        %v850 = vadd.f32 %v848, %v849
        %v851 = vrot.slane %v850, 1
        %v852 = vadd.f32 %v850, %v851
        %vm853 = vcmp.ge.f32.partialorder %v852, %v742
        %v854 = vsel %vm853, %v840, %v837
        %v855 = vsel %vm853, %v838, %v840
        %v856 = vadd.f32 %v854, %v855
        %v857 = vmul.f32 %v856, 0.5
        %vm858 = vcmp.ge.f32.partialorder %v740, %v857
        %v859 = vsel %vm858, 1.0, 0.0
        %v860 = vsel %vm447, %v859, 0.0
        %861 = vadd.xlane.f32.xlu0 %v860
        %v862 = vpop.xlane.xlu0 %861
        %v863 = vsel %vm447, %v862, 0.0
        %v864 = vrot.slane %v863, 4
        %v865 = vadd.f32 %v863, %v864
        %v866 = vrot.slane %v865, 2
        %v867 = vadd.f32 %v865, %v866
        %v868 = vrot.slane %v867, 1
        %v869 = vadd.f32 %v867, %v868
        %vm870 = vcmp.ge.f32.partialorder %v869, %v742
        %v871 = vsel %vm870, %v857, %v854
        %v872 = vsel %vm870, %v855, %v857
        %v873 = vadd.f32 %v871, %v872
        %v874 = vmul.f32 %v873, 0.5
        %vm875 = vcmp.ge.f32.partialorder %v740, %v874
        %v876 = vsel %vm875, 1.0, 0.0
        %v877 = vsel %vm447, %v876, 0.0
        %878 = vadd.xlane.f32.xlu0 %v877
        %v879 = vpop.xlane.xlu0 %878
        %v880 = vsel %vm447, %v879, 0.0
        %v881 = vrot.slane %v880, 4
        %v882 = vadd.f32 %v880, %v881
        %v883 = vrot.slane %v882, 2
        %v884 = vadd.f32 %v882, %v883
        %v885 = vrot.slane %v884, 1
        %v886 = vadd.f32 %v884, %v885
        %vm887 = vcmp.ge.f32.partialorder %v886, %v742
        %v888 = vsel %vm887, %v874, %v871
        %v889 = vsel %vm887, %v872, %v874
        %v890 = vadd.f32 %v888, %v889
        %v891 = vmul.f32 %v890, 0.5
        %vm892 = vcmp.ge.f32.partialorder %v740, %v891
        %v893 = vsel %vm892, 1.0, 0.0
        %v894 = vsel %vm447, %v893, 0.0
        %895 = vadd.xlane.f32.xlu0 %v894
        %v896 = vpop.xlane.xlu0 %895
        %v897 = vsel %vm447, %v896, 0.0
        %v898 = vrot.slane %v897, 4
        %v899 = vadd.f32 %v897, %v898
        %v900 = vrot.slane %v899, 2
        %v901 = vadd.f32 %v899, %v900
        %v902 = vrot.slane %v901, 1
        %v903 = vadd.f32 %v901, %v902
        %vm904 = vcmp.ge.f32.partialorder %v903, %v742
        %v905 = vsel %vm904, %v891, %v888
        %v906 = vsel %vm904, %v889, %v891
        %v907 = vadd.f32 %v905, %v906
        %v908 = vmul.f32 %v907, 0.5
        %vm909 = vcmp.ge.f32.partialorder %v740, %v908
        %v910 = vsel %vm909, 1.0, 0.0
        %v911 = vsel %vm447, %v910, 0.0
        %912 = vadd.xlane.f32.xlu0 %v911
        %v913 = vpop.xlane.xlu0 %912
        %v914 = vsel %vm447, %v913, 0.0
        %v915 = vrot.slane %v914, 4
        %v916 = vadd.f32 %v914, %v915
        %v917 = vrot.slane %v916, 2
        %v918 = vadd.f32 %v916, %v917
        %v919 = vrot.slane %v918, 1
        %v920 = vadd.f32 %v918, %v919
        %vm921 = vcmp.ge.f32.partialorder %v920, %v742
        %v922 = vsel %vm921, %v908, %v905
        %v923 = vsel %vm921, %v906, %v908
        %v924 = vadd.f32 %v922, %v923
        %v925 = vmul.f32 %v924, 0.5
        %vm926 = vcmp.ge.f32.partialorder %v740, %v925
        %v927 = vsel %vm926, 1.0, 0.0
        %v928 = vsel %vm447, %v927, 0.0
        %929 = vadd.xlane.f32.xlu0 %v928
        %v930 = vpop.xlane.xlu0 %929
        %v931 = vsel %vm447, %v930, 0.0
        %v932 = vrot.slane %v931, 4
        %v933 = vadd.f32 %v931, %v932
        %v934 = vrot.slane %v933, 2
        %v935 = vadd.f32 %v933, %v934
        %v936 = vrot.slane %v935, 1
        %v937 = vadd.f32 %v935, %v936
        %vm938 = vcmp.ge.f32.partialorder %v937, %v742
        %v939 = vsel %vm938, %v925, %v922
        %v940 = vsel %vm938, %v923, %v925
        %v941 = vadd.f32 %v939, %v940
        %v942 = vmul.f32 %v941, 0.5
        %vm943 = vcmp.ge.f32.partialorder %v740, %v942
        %v944 = vsel %vm943, 1.0, 0.0
        %v945 = vsel %vm447, %v944, 0.0
        %946 = vadd.xlane.f32.xlu0 %v945
        %v947 = vpop.xlane.xlu0 %946
        %v948 = vsel %vm447, %v947, 0.0
        %v949 = vrot.slane %v948, 4
        %v950 = vadd.f32 %v948, %v949
        %v951 = vrot.slane %v950, 2
        %v952 = vadd.f32 %v950, %v951
        %v953 = vrot.slane %v952, 1
        %v954 = vadd.f32 %v952, %v953
        %vm955 = vcmp.ge.f32.partialorder %v954, %v742
        %v956 = vsel %vm955, %v942, %v939
        %v957 = vsel %vm955, %v940, %v942
        %v958 = vadd.f32 %v956, %v957
        %v959 = vmul.f32 %v958, 0.5
        %vm960 = vcmp.ge.f32.partialorder %v740, %v959
        %v961 = vsel %vm960, 1.0, 0.0
        %v962 = vsel %vm447, %v961, 0.0
        %963 = vadd.xlane.f32.xlu0 %v962
        %v964 = vpop.xlane.xlu0 %963
        %v965 = vsel %vm447, %v964, 0.0
        %v966 = vrot.slane %v965, 4
        %v967 = vadd.f32 %v965, %v966
        %v968 = vrot.slane %v967, 2
        %v969 = vadd.f32 %v967, %v968
        %v970 = vrot.slane %v969, 1
        %v971 = vadd.f32 %v969, %v970
        %vm972 = vcmp.ge.f32.partialorder %v971, %v742
        %v973 = vsel %vm972, %v959, %v956
        %v974 = vsel %vm972, %v957, %v959
        %v975 = vadd.f32 %v973, %v974
        %v976 = vmul.f32 %v975, 0.5
        %vm977 = vcmp.ge.f32.partialorder %v740, %v976
        %v978 = vsel %vm977, 1.0, 0.0
        %v979 = vsel %vm447, %v978, 0.0
        %980 = vadd.xlane.f32.xlu0 %v979
        %v981 = vpop.xlane.xlu0 %980
        %v982 = vsel %vm447, %v981, 0.0
        %v983 = vrot.slane %v982, 4
        %v984 = vadd.f32 %v982, %v983
        %v985 = vrot.slane %v984, 2
        %v986 = vadd.f32 %v984, %v985
        %v987 = vrot.slane %v986, 1
        %v988 = vadd.f32 %v986, %v987
        %vm989 = vcmp.ge.f32.partialorder %v988, %v742
        %v990 = vsel %vm989, %v976, %v973
        %v991 = vsel %vm989, %v974, %v976
        %v992 = vadd.f32 %v990, %v991
        %v993 = vmul.f32 %v992, 0.5
        %vm994 = vcmp.ge.f32.partialorder %v740, %v993
        %v995 = vsel %vm994, 1.0, 0.0
        %v996 = vsel %vm447, %v995, 0.0
        %997 = vadd.xlane.f32.xlu0 %v996
        %v998 = vpop.xlane.xlu0 %997
        %v999 = vsel %vm447, %v998, 0.0
        %v1000 = vrot.slane %v999, 4
        %v1001 = vadd.f32 %v999, %v1000
        %v1002 = vrot.slane %v1001, 2
        %v1003 = vadd.f32 %v1001, %v1002
        %v1004 = vrot.slane %v1003, 1
        %v1005 = vadd.f32 %v1003, %v1004
        %vm1006 = vcmp.ge.f32.partialorder %v1005, %v742
        %v1007 = vsel %vm1006, %v993, %v990
        %v1008 = vsel %vm1006, %v991, %v993
        %v1009 = vadd.f32 %v1007, %v1008
        %v1010 = vmul.f32 %v1009, 0.5
        %vm1011 = vcmp.ge.f32.partialorder %v740, %v1010
        %v1012 = vsel %vm1011, 1.0, 0.0
        %v1013 = vsel %vm447, %v1012, 0.0
        %1014 = vadd.xlane.f32.xlu0 %v1013
        %v1015 = vpop.xlane.xlu0 %1014
        %v1016 = vsel %vm447, %v1015, 0.0
        %v1017 = vrot.slane %v1016, 4
        %v1018 = vadd.f32 %v1016, %v1017
        %v1019 = vrot.slane %v1018, 2
        %v1020 = vadd.f32 %v1018, %v1019
        %v1021 = vrot.slane %v1020, 1
        %v1022 = vadd.f32 %v1020, %v1021
        %vm1023 = vcmp.ge.f32.partialorder %v1022, %v742
        %v1024 = vsel %vm1023, %v1010, %v1007
        %v1025 = vsel %vm1023, %v1008, %v1010
        %v1026 = vadd.f32 %v1024, %v1025
        %v1027 = vmul.f32 %v1026, 0.5
        %vm1028 = vcmp.ge.f32.partialorder %v740, %v1027
        %v1029 = vsel %vm1028, 1.0, 0.0
        %v1030 = vsel %vm447, %v1029, 0.0
        %1031 = vadd.xlane.f32.xlu0 %v1030
        %v1032 = vpop.xlane.xlu0 %1031
        %v1033 = vsel %vm447, %v1032, 0.0
        %v1034 = vrot.slane %v1033, 4
        %v1035 = vadd.f32 %v1033, %v1034
        %v1036 = vrot.slane %v1035, 2
        %v1037 = vadd.f32 %v1035, %v1036
        %v1038 = vrot.slane %v1037, 1
        %v1039 = vadd.f32 %v1037, %v1038
        %vm1040 = vcmp.ge.f32.partialorder %v1039, %v742
        %v1041 = vsel %vm1040, %v1027, %v1024
        %v1042 = vsel %vm1040, %v1025, %v1027
        %v1043 = vadd.f32 %v1041, %v1042
        %v1044 = vmul.f32 %v1043, 0.5
        %vm1045 = vcmp.ge.f32.partialorder %v740, %v1044
        %v1046 = vsel %vm1045, 1.0, 0.0
        %v1047 = vsel %vm447, %v1046, 0.0
        %1048 = vadd.xlane.f32.xlu0 %v1047
        %v1049 = vpop.xlane.xlu0 %1048
        %v1050 = vsel %vm447, %v1049, 0.0
        %v1051 = vrot.slane %v1050, 4
        %v1052 = vadd.f32 %v1050, %v1051
        %v1053 = vrot.slane %v1052, 2
        %v1054 = vadd.f32 %v1052, %v1053
        %v1055 = vrot.slane %v1054, 1
        %v1056 = vadd.f32 %v1054, %v1055
        %vm1057 = vcmp.ge.f32.partialorder %v1056, %v742
        %v1058 = vsel %vm1057, %v1044, %v1041
        %v1059 = vsel %vm1057, %v1042, %v1044
        %vm1060 = vcmp.ge.f32.partialorder %v740, %v1059
        %v1061 = vsel %vm1060, %v740, 0.0
        %v1062 = vsel %vm447, %v1061, 0.0
        %1063 = vadd.xlane.f32.xlu0 %v1062
        %v1064 = vpop.xlane.xlu0 %1063
        %v1065 = vsel %vm447, %v1064, 0.0
        %v1066 = vrot.slane %v1065, 4
        %v1067 = vadd.f32 %v1065, %v1066
        %v1068 = vrot.slane %v1067, 2
        %v1069 = vadd.f32 %v1067, %v1068
        %v1070 = vrot.slane %v1069, 1
        %v1071 = vadd.f32 %v1069, %v1070
        %v1072 = vsel %vm1060, 1.0, 0.0
        %v1073 = vsel %vm447, %v1072, 0.0
        %1074 = vadd.xlane.f32.xlu0 %v1073
        %v1075 = vpop.xlane.xlu0 %1074
        %v1076 = vsel %vm447, %v1075, 0.0
        %v1077 = vrot.slane %v1076, 4
        %v1078 = vadd.f32 %v1076, %v1077
        %v1079 = vrot.slane %v1078, 2
        %v1080 = vadd.f32 %v1078, %v1079
        %v1081 = vrot.slane %v1080, 1
        %v1082 = vadd.f32 %v1080, %v1081
        %v1083 = vsub.f32 %v742, %v1082
        %v1084 = vmax.f32 %v1083, 0.0
        %v1085 = vmul.f32 %v1084, %v1058
        %v1086 = vadd.f32 %v1071, %v1085
        %v1087 = vadd.f32 %v737, %v1086
        %v1088 = vadd.f32 %v1087, %v536
        %v1089 = vrcp.pop %v457
        %v1090 = vmul.f32 %v1088, %v1089
        %vm1091 = vcmp.eq.s32.totalorder %v283, 0
        %vm1092 = vcmp.eq.s32.totalorder %v283, 1
        %v1093 = vsel %vm1092, %v457, 0.0
        %v1094 = vsel %vm1091, %v1090, %v1093
        %1095 = vst [vmem:[%s281] sm:$0xff] %v1094
        %s1096 = sand.u32 %s127, 1
        %s1097 = scalar_lea.sflag [#allocation4], %s1096
        %s1098 = sand.u32 %s127, 1
        %s1099 = smul.addr %s1098, 8
        %s1100 = scalar_lea.vmem [#allocation10], %s1099
        // Predicated region
        $region60: #{tpu_custom_call.1} parent=35 // pred_check
          %p1101 = pneg %p137
        $region61: #{tpu_custom_call.1} parent=35 // pred_check_branch
          %1103 = sbr.rel (%p1101) target = $region63
        $region62: #{tpu_custom_call.1} parent=35 // pred_region
          %s1105 = ssub.s32 128, 128
          %1106 = vsyncadd %s1097, %s1105
          %s1107 = smul.addr %s25, 128
          %s1108 = scalar_lea.hbm %s4, %s1107
          %s1110 = sshll.u32 %s1100, 4
          %s1111 = int_to_ptr.vmem [resolvable:$true] %s1110
          %1113 = dma.vmem_to_hbm [thread:$0]  %s1111, 128, %s1108, %s1097
        $region63: #{tpu_custom_call.1} parent=35 // pred_fallthru
          _
      $region36: #{tpu_custom_call.1} parent=5 // pred_fallthru
        _
      %p1114 = scmp.le.s32.totalorder 2, %s20
      // Predicated region
      $region64: #{tpu_custom_call.1} parent=5 // pred_check
        %p1115 = pneg %p1114
      $region65: #{tpu_custom_call.1} parent=5 // pred_check_branch
        %1117 = sbr.rel (%p1115) target = $region67
      $region66: #{tpu_custom_call.1} parent=5 // pred_region
        %s1118 = ssub.s32 %s20, 2
        // Predicated region
        $region68: #{tpu_custom_call.1} parent=66 // pred_check
          %p1119 = pneg %p143
        $region69: #{tpu_custom_call.1} parent=66 // pred_check_branch
          %1121 = sbr.rel (%p1119) target = $region71
        $region70: #{tpu_custom_call.1} parent=66 // pred_region
          %s1122 = sand.u32 %s128, 1
          %s1123 = scalar_lea.sflag [#allocation4], %s1122
          %s1124 = sand.u32 %s128, 1
          %s1125 = smul.addr %s1124, 8
          %s1126 = scalar_lea.vmem [#allocation10], %s1125
          %1127 = dma.done %s1123, 128
        $region71: #{tpu_custom_call.1} parent=66 // pred_fallthru
          _
      $region67: #{tpu_custom_call.1} parent=5 // pred_fallthru
        _
    $region6: #{tpu_custom_call.1} parent=1 // loop_footer
      %s24 = sadd.s32 1, %s20
    $region7: #{tpu_custom_call.1} parent=1 // loop_footer_branch
      %19 = sbr.rel target = $region3
    $region8: #{tpu_custom_call.1} parent=1 // loop_exit
      _
    %1128 = vsyncpa [#allocation3], 1
    %s1129 = scalar_lea.sflag [#allocation3], 1
    %1130 = vsyncpa %s1129, 1
    %1131 = vsyncpa [#allocation8], 1
    %s1132 = scalar_lea.sflag [#allocation8], 1
    %1133 = vsyncpa %s1132, 1
    %1134 = vsyncpa [#allocation4], 1
    %s1135 = scalar_lea.sflag [#allocation4], 1
    %1136 = vsyncpa %s1135, 1
    %1137 = vsyncpa [#allocation5], 1
    %s1138 = scalar_lea.sflag [#allocation5], 1
    %1139 = vsyncpa %s1138, 1

</llo_original>
